<compile_context>
chip_gen: v6e
topology: v6e:2x2x1
jax: 0.10.0
libtpu: 0.0.40
codegen_flags: <defaults>
</compile_context>

<pallas_src>
import functools

import jax
import jax.numpy as jnp
from jax.experimental import pallas as pl
from jax.experimental.pallas import tpu as pltpu


def _round_up(x, m):
    return ((x + m - 1) // m) * m


def _cdiv(a, b):
    return -(-a // b)


def cnn_classifier_kernel(x_ref, w_ref, b_ref, fcw_ref, fcb_ref, out_ref, *,
                          wmax, lo_chunk, n_chunks):
    """Fused TextCNN forward for one batch tile.

    Per Lo-chunk: im2col (static shifted slices) -> one MXU matmul covering all
    branches / window taps (K = wmax*D, N = FP) -> chunk max folded into a
    (TB, FP) running max.  Epilogue: bias + tanh on (TB, FP) only, then the FC
    head into a lane-dense (TB, CP) slab.
    """
    w = w_ref[...]                                     # (wmax*D, FP) bf16, resident

    def chunk_max(start):
        # rows [start, start + lo_chunk + wmax - 1) of the padded sequence
        xc = x_ref[:, pl.ds(start, lo_chunk + wmax - 1), :]        # (TB, lc+w-1, D)
        # im2col: xs[b, t, k*D + d] = x[b, start+t+k, d]
        # TODO(synk): if a bundle profile shows the copy/XLU path (not MXU/EUP)
        # saturating, switch to per-tap accumulation:
        #   acc = sum_k dot(xc[:, k:k+lc, :], w[k*D:(k+1)*D, :])
        xs = jnp.concatenate([xc[:, k:k + lo_chunk, :] for k in range(wmax)],
                             axis=-1)                               # (TB, lc, wmax*D)
        acc = jax.lax.dot_general(
            xs, w, dimension_numbers=(((2,), (0,)), ((), ())),
            preferred_element_type=jnp.float32)                     # (TB, lc, FP) f32
        return jnp.max(acc, axis=1)                                 # (TB, FP) f32

    m = chunk_max(0)                                   # chunk 0 peeled (static slice)
    if n_chunks > 1:
        def body(c, m_run):
            start = pl.multiple_of(c * lo_chunk, 16)   # 16-sublane aligned (bf16)
            return jnp.maximum(m_run, chunk_max(start))
        m = jax.lax.fori_loop(1, n_chunks, body, m)

    # Dropout -> identity at inference; BatchNorm unused (use_batch_norm=False).
    # max-pool commuted ahead of bias+tanh: exact, and EUP work is TB*FP only.
    feats = jnp.tanh(m + b_ref[...])                   # (TB, FP)
    out_ref[...] = (
        jnp.dot(feats.astype(fcw_ref.dtype), fcw_ref[...],
                preferred_element_type=jnp.float32)
        + fcb_ref[...])


def prepare_params(emb, conv_ws, conv_bs, fc_w, fc_b, *,
                   window_sizes, max_norm=0.2, pad=5):
    """One-time packing of PyTorch-layout weights into the fused kernel layout."""
    wmax = max(window_sizes)
    # The fused wmax-wide conv + alignment padding is exact only if every branch
    # has at least one all-zero window, i.e. conv padding >= wmax.
    assert pad >= wmax, f"fused conv packing requires pad ({pad}) >= max window ({wmax})"

    # nn.Embedding(max_norm=0.2): renormalize rows whose L2 norm exceeds 0.2.
    # (torch renorms only looked-up rows in place during forward; renorming the
    #  whole static table once is equivalent for inference.)
    norms = jnp.linalg.norm(emb, axis=-1, keepdims=True)
    emb = emb * jnp.minimum(1.0, max_norm / jnp.maximum(norms, 1e-7))

    D = emb.shape[1]
    n_classes = fc_w.shape[0]
    CP = _round_up(n_classes, 128)

    # Per-branch lane-aligned column offsets (filters padded e.g. 100 -> 128).
    offs, FP = [], 0
    for W in conv_ws:
        offs.append(FP)
        FP += _round_up(W.shape[0], 128)

    K = wmax * D
    w_stack = jnp.zeros((K, FP), jnp.float32)          # stacked im2col conv weights
    b_stack = jnp.zeros((1, FP), jnp.float32)
    fc_stack = jnp.zeros((FP, CP), jnp.float32)
    fcb_stack = jnp.zeros((1, CP), jnp.float32).at[0, :n_classes].set(fc_b)

    col = 0                                            # row offset into torch fc weight
    for off, W, bvec, wsz in zip(offs, conv_ws, conv_bs, window_sizes):
        F = W.shape[0]
        # Zero-pad the window axis to wmax (zeros at the tail), flatten to im2col.
        wp = jnp.zeros((F, wmax, D), jnp.float32).at[:, :wsz, :].set(W)
        w_stack = w_stack.at[:, off:off + F].set(wp.reshape(F, K).T)
        b_stack = b_stack.at[0, off:off + F].set(bvec.reshape(-1))
        # torch fc weight is (C, sum_f); scatter its rows to the padded offsets.
        fc_stack = fc_stack.at[off:off + F, :n_classes].set(fc_w[:, col:col + F].T)
        col += F

    return dict(
        emb=emb.astype(jnp.bfloat16),                  # bf16 gather -> half HBM traffic
        conv_w=w_stack.astype(jnp.bfloat16),           # (wmax*D, FP) bf16
        conv_b=b_stack,                                # (1, FP) f32
        fc_w=fc_stack.astype(jnp.bfloat16),            # (FP, CP) bf16
        fc_b=fcb_stack,                                # (1, CP) f32
        wmax=wmax, pad=pad, n_classes=n_classes)


def _pick_batch_tile(B, lp_estimate):
    """Batch tile: 8/16/32 by batch, clamped so the lane-padded x tile
    (TB * Lp * 128 lanes * 2B * 2 buffers) stays well inside scoped VMEM."""
    if B >= 64:
        TB = 32
    elif B >= 16:
        TB = 16
    else:
        TB = 8
    while TB > 8 and 2 * TB * lp_estimate * 128 * 2 > (16 << 20):
        TB //= 2
    return TB


def cnn_classifier_forward(token_ids, params):
    emb = params["emb"]
    wmax, pad, n_classes = params["wmax"], params["pad"], params["n_classes"]
    B, L = token_ids.shape
    D = emb.shape[1]

    w, b, fcw, fcb = params["conv_w"], params["conv_b"], params["fc_w"], params["fc_b"]
    K, FP = w.shape
    CP = fcw.shape[1]

    # TODO(synk): embedding gather stays in XLA (Mosaic in-kernel vocab gather
    # is restrictive); everything from the conv onward is fused below.  The
    # table is already bf16, so the gather -> pad chain writes half the bytes.
    x = jnp.take(emb, token_ids, axis=0)               # (B, L, D) bf16

    # --- batch tiling --------------------------------------------------------
    TB = _pick_batch_tile(B, L + 2 * pad + 64)
    # Keep the parallel grid at >= 2 steps so both v7x TensorCores get work even
    # for tiny batches (the extra all-zero tile is negligible on 1-TC chips).
    Bp = max(_round_up(B, TB), 2 * TB)

    # --- time-axis tiling ----------------------------------------------------
    # Conv2d padding=(pad, 0), plus alignment so the fused conv output splits
    # into equal 16-aligned chunks.  Extra all-zero windows contribute acc == 0,
    # already produced by the leading all-zero-pad window -> max unchanged.
    lo_raw = L + 2 * pad - wmax + 1
    lo_full = _round_up(lo_raw, 16)
    # ~2k conv-matmul rows per chunk: bounds the f32 accumulator to a few MB
    # independent of sequence length while keeping the MXU M-dim well fed.
    cap = max(16, min(512, _round_up(max(16, 2048 // TB), 16)))
    n_chunks = _cdiv(lo_full, cap)
    lo_chunk = _round_up(_cdiv(lo_full, n_chunks), 16)
    Lo = lo_chunk * n_chunks
    extra = Lo - lo_raw
    x = jnp.pad(x, ((0, Bp - B), (pad, pad + extra), (0, 0)))
    Lp = x.shape[1]                                    # == Lo + wmax - 1

    # --- VMEM budget: size vmem_limit_bytes from the actual tile math ---------
    x_tile = TB * Lp * 128 * 2                         # D=32 lane-pads to 128
    xs_tile = TB * lo_chunk * _round_up(K, 128) * 2
    acc_tile = TB * lo_chunk * FP * 4
    w_bytes = (K * FP + FP * CP) * 2 + 8 * (FP + CP) * 4
    out_tile = TB * CP * 4
    est = 2 * (x_tile + out_tile + w_bytes) + xs_tile + acc_tile + (8 << 20)
    vmem_limit = int(min(max(est, 32 << 20), 64 << 20))

    # NOTE: conv_w/conv_b/fc_w/fc_b use constant index maps so they stay VMEM
    # resident across the grid; single-buffering them (pipeline_mode=Buffered(1))
    # would free ~0.4 MB more headroom on v7x if it is ever needed.
    out = pl.pallas_call(
        functools.partial(cnn_classifier_kernel, wmax=wmax,
                          lo_chunk=lo_chunk, n_chunks=n_chunks),
        out_shape=jax.ShapeDtypeStruct((Bp, CP), jnp.float32),
        grid_spec=pltpu.PrefetchScalarGridSpec(
            num_scalar_prefetch=0,
            grid=(Bp // TB,),
            in_specs=[
                pl.BlockSpec((TB, Lp, D), lambda i: (i, 0, 0)),   # x, batch-tiled
                pl.BlockSpec((K, FP), lambda i: (0, 0)),          # stacked conv W
                pl.BlockSpec((1, FP), lambda i: (0, 0)),          # stacked conv b
                pl.BlockSpec((FP, CP), lambda i: (0, 0)),         # padded fc W
                pl.BlockSpec((1, CP), lambda i: (0, 0)),          # padded fc b
            ],
            out_specs=pl.BlockSpec((TB, CP), lambda i: (i, 0)),
        ),
        compiler_params=pltpu.CompilerParams(
            dimension_semantics=("parallel",),
            vmem_limit_bytes=vmem_limit),
    )(x, w, b, fcw, fcb)

    return out[:B, :n_classes]


def reference_forward(token_ids, emb, conv_ws, conv_bs, fc_w, fc_b, *,
                      window_sizes, pad=5, max_norm=0.2):
    """Pure-JAX f32 mirror of the PyTorch forward (per-branch convs, concat)."""
    norms = jnp.linalg.norm(emb, axis=-1, keepdims=True)
    emb_n = emb * jnp.minimum(1.0, max_norm / jnp.maximum(norms, 1e-7))
    x = jnp.take(emb_n, token_ids, axis=0)
    x = jnp.pad(x, ((0, 0), (pad, pad), (0, 0)))
    feats = []
    for W, bvec, w in zip(conv_ws, conv_bs, window_sizes):
        Lo = x.shape[1] - w + 1
        conv = bvec.reshape(1, 1, -1) + sum(
            jnp.einsum("bld,fd->blf", x[:, k:k + Lo, :], W[:, k, :])
            for k in range(w))
        feats.append(jnp.max(jnp.tanh(conv), axis=1))
    feats = jnp.concatenate(feats, axis=-1)
    return feats @ fc_w.T + fc_b


def _make_weights(key, V, D, n_classes, window_sizes, n_filters):
    keys = jax.random.split(key, 2 * len(window_sizes) + 3)
    # Embedding table ~ N(0, 1) like nn.Embedding default init.
    emb = jax.random.normal(keys[0], (V, D), jnp.float32)
    conv_w, conv_b = [], []
    for i, (w, f) in enumerate(zip(window_sizes, n_filters)):
        bound = 1.0 / float((1 * w * D) ** 0.5)
        conv_w.append(jax.random.uniform(keys[1 + 2 * i], (f, w, D),
                                         jnp.float32, -bound, bound))
        conv_b.append(jax.random.uniform(keys[2 + 2 * i], (f,),
                                         jnp.float32, -bound, bound))
    sum_f = sum(n_filters)
    bound = 1.0 / float(sum_f ** 0.5)
    fc_w = jax.random.uniform(keys[-2], (n_classes, sum_f), jnp.float32, -bound, bound)
    fc_b = jax.random.uniform(keys[-1], (n_classes,), jnp.float32, -bound, bound)
    return emb, conv_w, conv_b, fc_w, fc_b


if __name__ == "__main__":
    # Module-consistent small config: vocab 50, dim 32, 3 branches x 100 filters.
    V, D = 50, 32
    n_classes = 4
    window_sizes = (3, 4, 5)
    n_filters = (100, 100, 100)

    root = jax.random.PRNGKey(0)
    wkey, k1, k2 = jax.random.split(root, 3)
    emb, conv_w, conv_b, fc_w, fc_b = _make_weights(
        wkey, V, D, n_classes, window_sizes, n_filters)
    packed = prepare_params(emb, conv_w, conv_b, fc_w, fc_b,
                            window_sizes=window_sizes)

    # Case "small": tiny batch/seq, single Lo chunk, 2-step parallel grid.
    # Case "chunked": exercises the running-max fori_loop and the TB=16 tile.
    for tag, key, (B, L) in (("small", k1, (2, 16)), ("chunked", k2, (20, 160))):
        token_ids = jax.random.randint(key, (B, L), 0, V, dtype=jnp.int32)
        y = jax.block_until_ready(cnn_classifier_forward(token_ids, packed))
        assert y.shape == (B, n_classes) and y.dtype == jnp.float32
        # Sanity-check vs the unfused f32 reference (bf16 operands -> loose tol).
        y_ref = reference_forward(token_ids, emb, conv_w, conv_b, fc_w, fc_b,
                                  window_sizes=window_sizes)
        err = float(jnp.max(jnp.abs(y - y_ref)))
        assert err < 2e-2, f"{tag}: mismatch vs reference, max abs err {err}"

    print("KERNEL_OK")
</pallas_src>

<mosaic_0001>
module attributes {stable_mosaic.version = 11 : i64} {
  func.func @cnn_classifier_kernel(%arg0: i32, %arg1: memref<8x36x32xbf16, #tpu.memory_space<vmem>>, %arg2: memref<160x384xbf16, #tpu.memory_space<vmem>>, %arg3: memref<1x384xf32, #tpu.memory_space<vmem>>, %arg4: memref<384x128xbf16, #tpu.memory_space<vmem>>, %arg5: memref<1x128xf32, #tpu.memory_space<vmem>>, %arg6: memref<8x128xf32, #tpu.memory_space<vmem>>) attributes {dimension_semantics = [#tpu.dimension_semantics<parallel>], iteration_bounds = array<i64: 2>, scalar_prefetch = 0 : i64, scratch_operands = 0 : i64, tpu.core_type = #tpu.core_type<tc>, window_params = [{transform_indices = @transform_0, window_bounds = array<i64: 8, 36, 32>}, {pipeline_mode = #tpu.pipeline_mode<synchronous>, transform_indices = @transform_1, window_bounds = array<i64: 160, 384>}, {pipeline_mode = #tpu.pipeline_mode<synchronous>, transform_indices = @transform_2, window_bounds = array<i64: 1, 384>}, {pipeline_mode = #tpu.pipeline_mode<synchronous>, transform_indices = @transform_3, window_bounds = array<i64: 384, 128>}, {pipeline_mode = #tpu.pipeline_mode<synchronous>, transform_indices = @transform_4, window_bounds = array<i64: 1, 128>}, {transform_indices = @transform_5, window_bounds = array<i64: 8, 128>}]} {
    %c0 = arith.constant 0 : index
    %c0_0 = arith.constant 0 : index
    %0 = vector.load %arg2[%c0, %c0_0] : memref<160x384xbf16, #tpu.memory_space<vmem>>, vector<160x384xbf16>
    %c0_1 = arith.constant 0 : index
    %c0_2 = arith.constant 0 : index
    %c0_3 = arith.constant 0 : index
    %1 = vector.load %arg1[%c0_1, %c0_2, %c0_3] : memref<8x36x32xbf16, #tpu.memory_space<vmem>>, vector<8x36x32xbf16>
    %2 = vector.extract_strided_slice %1 {offsets = [0, 0, 0], sizes = [8, 32, 32], strides = [1, 1, 1]} : vector<8x36x32xbf16> to vector<8x32x32xbf16>
    %3 = vector.extract_strided_slice %1 {offsets = [0, 1, 0], sizes = [8, 32, 32], strides = [1, 1, 1]} : vector<8x36x32xbf16> to vector<8x32x32xbf16>
    %4 = vector.extract_strided_slice %1 {offsets = [0, 2, 0], sizes = [8, 32, 32], strides = [1, 1, 1]} : vector<8x36x32xbf16> to vector<8x32x32xbf16>
    %5 = vector.extract_strided_slice %1 {offsets = [0, 3, 0], sizes = [8, 32, 32], strides = [1, 1, 1]} : vector<8x36x32xbf16> to vector<8x32x32xbf16>
    %6 = vector.extract_strided_slice %1 {offsets = [0, 4, 0], sizes = [8, 32, 32], strides = [1, 1, 1]} : vector<8x36x32xbf16> to vector<8x32x32xbf16>
    %7 = tpu.concatenate %2, %3, %4, %5, %6 in 2 : vector<8x32x32xbf16>, vector<8x32x32xbf16>, vector<8x32x32xbf16>, vector<8x32x32xbf16>, vector<8x32x32xbf16> -> vector<8x32x160xbf16>
    %cst = arith.constant dense<0.000000e+00> : vector<8x32x384xf32>
    %8 = tpu.matmul %7, %0, %cst {dimension_numbers = #tpu.dot_dimension_numbers<[2], [0], [0, 1], [1], [0, 0, 0, 1, 1, 1], [], []>} : vector<8x32x160xbf16>, vector<160x384xbf16>, vector<8x32x384xf32> -> vector<8x32x384xf32>
    %cst_4 = arith.constant dense<0xFF800000> : vector<8x384xf32>
    %9 = vector.multi_reduction <maximumf>, %8, %cst_4 [1] : vector<8x32x384xf32> to vector<8x384xf32>
    %c0_5 = arith.constant 0 : index
    %c0_6 = arith.constant 0 : index
    %10 = vector.load %arg3[%c0_5, %c0_6] : memref<1x384xf32, #tpu.memory_space<vmem>>, vector<1x384xf32>
    %11 = vector.broadcast %10 : vector<1x384xf32> to vector<8x384xf32>
    %12 = arith.addf %9, %11 : vector<8x384xf32>
    %13 = math.tanh %12 : vector<8x384xf32>
    %14 = arith.truncf %13 : vector<8x384xf32> to vector<8x384xbf16>
    %c0_7 = arith.constant 0 : index
    %c0_8 = arith.constant 0 : index
    %15 = vector.load %arg4[%c0_7, %c0_8] : memref<384x128xbf16, #tpu.memory_space<vmem>>, vector<384x128xbf16>
    %cst_9 = arith.constant dense<0.000000e+00> : vector<8x128xf32>
    %16 = tpu.matmul %14, %15, %cst_9 {dimension_numbers = #tpu.dot_dimension_numbers<[1], [0], [0], [1], [0, 0, 1, 1], [], []>} : vector<8x384xbf16>, vector<384x128xbf16>, vector<8x128xf32> -> vector<8x128xf32>
    %c0_10 = arith.constant 0 : index
    %c0_11 = arith.constant 0 : index
    %17 = vector.load %arg5[%c0_10, %c0_11] : memref<1x128xf32, #tpu.memory_space<vmem>>, vector<1x128xf32>
    %18 = vector.broadcast %17 : vector<1x128xf32> to vector<8x128xf32>
    %19 = arith.addf %16, %18 : vector<8x128xf32>
    %c0_12 = arith.constant 0 : index
    %c0_13 = arith.constant 0 : index
    %20 = vector.load %arg6[%c0_12, %c0_13] : memref<8x128xf32, #tpu.memory_space<vmem>>, vector<8x128xf32>
    tpu.vector_store %arg6[%c0_12, %c0_13], %19 {strides = array<i32>} : memref<8x128xf32, #tpu.memory_space<vmem>>, vector<8x128xf32>,
    return
  }
  func.func @transform_0(%arg0: i32) -> (i32, i32, i32) {
    %c0_i32 = arith.constant 0 : i32
    %c0_i32_0 = arith.constant 0 : i32
    %c0_i32_1 = arith.constant 0 : i32
    return %arg0, %c0_i32, %c0_i32_0 : i32, i32, i32
  }
  func.func @transform_1(%arg0: i32) -> (i32, i32) {
    %c0_i32 = arith.constant 0 : i32
    %c0_i32_0 = arith.constant 0 : i32
    %c0_i32_1 = arith.constant 0 : i32
    return %c0_i32, %c0_i32_0 : i32, i32
  }
  func.func @transform_2(%arg0: i32) -> (i32, i32) {
    %c0_i32 = arith.constant 0 : i32
    %c0_i32_0 = arith.constant 0 : i32
    %c0_i32_1 = arith.constant 0 : i32
    return %c0_i32, %c0_i32_0 : i32, i32
  }
  func.func @transform_3(%arg0: i32) -> (i32, i32) {
    %c0_i32 = arith.constant 0 : i32
    %c0_i32_0 = arith.constant 0 : i32
    %c0_i32_1 = arith.constant 0 : i32
    return %c0_i32, %c0_i32_0 : i32, i32
  }
  func.func @transform_4(%arg0: i32) -> (i32, i32) {
    %c0_i32 = arith.constant 0 : i32
    %c0_i32_0 = arith.constant 0 : i32
    %c0_i32_1 = arith.constant 0 : i32
    return %c0_i32, %c0_i32_0 : i32, i32
  }
  func.func @transform_5(%arg0: i32) -> (i32, i32) {
    %c0_i32 = arith.constant 0 : i32
    %c0_i32_0 = arith.constant 0 : i32
    return %arg0, %c0_i32 : i32, i32
  }
}

</mosaic_0001>

<llo_original>
// kernel: tpu_custom_call.1
$region0: #{tpu_custom_call.1}
  #allocation0 [shape = 'u32[]', space=smem, size = 0x4, offset = 0x4, fixed_abs, tag = 'smem constant byte address 0x4 - core index']
  #allocation1 [shape = 'u32[144,128]{1,0:T(1,128)}', space=vmem, size = 0x12000, scoped, tag = 'internal scratch']
  %s0 = inlined_call_operand.vmem [shape: bf16[16,36,32], index: 0, kind: input, shape index: {}]
  %s1 = inlined_call_operand.vmem [shape: bf16[160,384], index: 1, kind: input, shape index: {}]
  %s2 = inlined_call_operand.vmem [shape: f32[1,384], index: 2, kind: input, shape index: {}]
  %s3 = inlined_call_operand.vmem [shape: bf16[384,128], index: 3, kind: input, shape index: {}]
  %s4 = inlined_call_operand.vmem [shape: f32[1,128], index: 4, kind: input, shape index: {}]
  %s5 = inlined_call_operand.hbm [shape: f32[16,128], index: 5, kind: output, shape index: {}]
  %s6 = sld [smem:[#allocation0]]
  $region53: #{tpu_custom_call.1} parent=0
    _
  %s8 = ssub.s32 1, %s6
  %s9 = scalar_select 0, %s8, %s6
  $region1: #{tpu_custom_call.1} parent=0
    #allocation2 [shape = 'u8[8192]{0}', space=vmem, size = 0x2000, scoped, tag = 'output window, operand 0']
    #allocation3 [shape = 's32[2]{0}', space=sflag, size = 0x8, scoped, tag = 'scoped memory for tpu_custom_call.1']
    %10 = vsyncpa [#allocation3], 0
    %s11 = scalar_lea.sflag [#allocation3], 1
    %12 = vsyncpa %s11, 0
    loop: start=0, step=1, limit=4
    $region2: #{tpu_custom_call.1} parent=1 // loop_pre_header
      _
    $region3: #{tpu_custom_call.1} parent=1 // loop_header
      %s14 = sphi 0, %s18
      %p15 = scmp.ge.s32.totalorder %s14, 4
      %s24 = sphi 0, %s26
      %s27 = sphi 0, %s24
      %s28 = sphi 0, %s27
      %s44 = sphi 0, %s28
      %s48 = sphi 0, %s48
      %s50 = sphi 0, %s48
      %s51 = sphi 0, %s50
      %s65 = sphi 0, %s51
      %s69 = sphi 0, %s69
      %s71 = sphi 0, %s69
      %s72 = sphi 0, %s71
      %s86 = sphi 0, %s72
      %s90 = sphi 0, %s90
      %s92 = sphi 0, %s90
      %s93 = sphi 0, %s92
      %s107 = sphi 0, %s93
      %s111 = sphi 0, %s111
      %s113 = sphi 0, %s111
      %s114 = sphi 0, %s113
      %s128 = sphi 0, %s114
      %s134 = sphi 0, %s136
      %s137 = sphi 0, %s134
      %s138 = sphi 0, %s137
      %s154 = sphi 0, %s138
    $region4: #{tpu_custom_call.1} parent=1 // loop_header_branch
      %17 = sbr.rel (%p15) target = $region8
    $region5: #{tpu_custom_call.1} parent=1 // loop_body
      %s19 = ssub.s32 %s14, 1
      %s20 = ssub.s32 %s14, 2
      %s21 = sadd.s32 %s14, 1
      %s22 = ssub.s32 %s14, %s21
      %p23 = scmp.eq.s32.totalorder %s22, 0
      %s25 = sadd.s32 %s24, 1
      %s26 = scalar_select %p23, %s24, %s25
      %p29 = pneg %p23
      %p30 = scmp.eq.s32.totalorder %s14, 1
      %p31 = por %p29, %p30
      %p32 = scmp.ne.s32.totalorder %s24, %s27
      %p33 = scmp.eq.s32.totalorder %s14, 0
      %p34 = por %p32, %p33
      %p35 = scmp.ne.s32.totalorder %s24, %s27
      %p36 = scmp.eq.s32.totalorder %s19, 1
      %p37 = por %p35, %p36
      %p38 = scmp.ne.s32.totalorder %s27, %s28
      %p39 = scmp.eq.s32.totalorder %s19, 0
      %p40 = por %p38, %p39
      %p41 = scmp.ne.s32.totalorder %s27, %s28
      %p42 = scmp.eq.s32.totalorder %s20, 1
      %p43 = por %p41, %p42
      %p45 = scmp.ne.s32.totalorder %s28, %s44
      %p46 = scmp.eq.s32.totalorder %s20, 0
      %p47 = por %p45, %p46
      %s49 = sadd.s32 %s48, 1
      %p52 = scmp.eq.s32.totalorder %s14, 1
      %p53 = scmp.ne.s32.totalorder %s48, %s50
      %p54 = scmp.eq.s32.totalorder %s14, 0
      %p55 = por %p53, %p54
      %p56 = scmp.ne.s32.totalorder %s48, %s50
      %p57 = scmp.eq.s32.totalorder %s19, 1
      %p58 = por %p56, %p57
      %p59 = scmp.ne.s32.totalorder %s50, %s51
      %p60 = scmp.eq.s32.totalorder %s19, 0
      %p61 = por %p59, %p60
      %p62 = scmp.ne.s32.totalorder %s50, %s51
      %p63 = scmp.eq.s32.totalorder %s20, 1
      %p64 = por %p62, %p63
      %p66 = scmp.ne.s32.totalorder %s51, %s65
      %p67 = scmp.eq.s32.totalorder %s20, 0
      %p68 = por %p66, %p67
      %s70 = sadd.s32 %s69, 1
      %p73 = scmp.eq.s32.totalorder %s14, 1
      %p74 = scmp.ne.s32.totalorder %s69, %s71
      %p75 = scmp.eq.s32.totalorder %s14, 0
      %p76 = por %p74, %p75
      %p77 = scmp.ne.s32.totalorder %s69, %s71
      %p78 = scmp.eq.s32.totalorder %s19, 1
      %p79 = por %p77, %p78
      %p80 = scmp.ne.s32.totalorder %s71, %s72
      %p81 = scmp.eq.s32.totalorder %s19, 0
      %p82 = por %p80, %p81
      %p83 = scmp.ne.s32.totalorder %s71, %s72
      %p84 = scmp.eq.s32.totalorder %s20, 1
      %p85 = por %p83, %p84
      %p87 = scmp.ne.s32.totalorder %s72, %s86
      %p88 = scmp.eq.s32.totalorder %s20, 0
      %p89 = por %p87, %p88
      %s91 = sadd.s32 %s90, 1
      %p94 = scmp.eq.s32.totalorder %s14, 1
      %p95 = scmp.ne.s32.totalorder %s90, %s92
      %p96 = scmp.eq.s32.totalorder %s14, 0
      %p97 = por %p95, %p96
      %p98 = scmp.ne.s32.totalorder %s90, %s92
      %p99 = scmp.eq.s32.totalorder %s19, 1
      %p100 = por %p98, %p99
      %p101 = scmp.ne.s32.totalorder %s92, %s93
      %p102 = scmp.eq.s32.totalorder %s19, 0
      %p103 = por %p101, %p102
      %p104 = scmp.ne.s32.totalorder %s92, %s93
      %p105 = scmp.eq.s32.totalorder %s20, 1
      %p106 = por %p104, %p105
      %p108 = scmp.ne.s32.totalorder %s93, %s107
      %p109 = scmp.eq.s32.totalorder %s20, 0
      %p110 = por %p108, %p109
      %s112 = sadd.s32 %s111, 1
      %p115 = scmp.eq.s32.totalorder %s14, 1
      %p116 = scmp.ne.s32.totalorder %s111, %s113
      %p117 = scmp.eq.s32.totalorder %s14, 0
      %p118 = por %p116, %p117
      %p119 = scmp.ne.s32.totalorder %s111, %s113
      %p120 = scmp.eq.s32.totalorder %s19, 1
      %p121 = por %p119, %p120
      %p122 = scmp.ne.s32.totalorder %s113, %s114
      %p123 = scmp.eq.s32.totalorder %s19, 0
      %p124 = por %p122, %p123
      %p125 = scmp.ne.s32.totalorder %s113, %s114
      %p126 = scmp.eq.s32.totalorder %s20, 1
      %p127 = por %p125, %p126
      %p129 = scmp.ne.s32.totalorder %s114, %s128
      %p130 = scmp.eq.s32.totalorder %s20, 0
      %p131 = por %p129, %p130
      %s132 = ssub.s32 %s14, %s21
      %p133 = scmp.eq.s32.totalorder %s132, 0
      %s135 = sadd.s32 %s134, 1
      %s136 = scalar_select %p133, %s134, %s135
      %p139 = pneg %p133
      %p140 = scmp.eq.s32.totalorder %s14, 1
      %p141 = por %p139, %p140
      %p142 = scmp.ne.s32.totalorder %s134, %s137
      %p143 = scmp.eq.s32.totalorder %s14, 0
      %p144 = por %p142, %p143
      %p145 = scmp.ne.s32.totalorder %s134, %s137
      %p146 = scmp.eq.s32.totalorder %s19, 1
      %p147 = por %p145, %p146
      %p148 = scmp.ne.s32.totalorder %s137, %s138
      %p149 = scmp.eq.s32.totalorder %s19, 0
      %p150 = por %p148, %p149
      %p151 = scmp.ne.s32.totalorder %s137, %s138
      %p152 = scmp.eq.s32.totalorder %s20, 1
      %p153 = por %p151, %p152
      %p155 = scmp.ne.s32.totalorder %s138, %s154
      %p156 = scmp.eq.s32.totalorder %s20, 0
      %p157 = por %p155, %p156
      %p158 = scmp.le.s32.totalorder 1, %s14
      %p159 = scmp.lt.s32.totalorder %s14, 3
      %p160 = pnand %p158, %p159
      %p161 = pneg %p160
      // Predicated region
      $region9: #{tpu_custom_call.1} parent=5 // pred_check
        _
      $region10: #{tpu_custom_call.1} parent=5 // pred_check_branch
        %163 = sbr.rel (%p160) target = $region12
      $region11: #{tpu_custom_call.1} parent=5 // pred_region
        %s164 = ssub.s32 %s14, 1
        // Predicated region
        $region13: #{tpu_custom_call.1} parent=11 // pred_check
          %p165 = pneg %p61
        $region14: #{tpu_custom_call.1} parent=11 // pred_check_branch
          %167 = sbr.rel (%p165) target = $region16
        $region15: #{tpu_custom_call.1} parent=11 // pred_region
          _
        $region16: #{tpu_custom_call.1} parent=11 // pred_fallthru
          _
        // Predicated region
        $region17: #{tpu_custom_call.1} parent=11 // pred_check
          %p168 = pneg %p82
        $region18: #{tpu_custom_call.1} parent=11 // pred_check_branch
          %170 = sbr.rel (%p168) target = $region20
        $region19: #{tpu_custom_call.1} parent=11 // pred_region
          _
        $region20: #{tpu_custom_call.1} parent=11 // pred_fallthru
          _
        // Predicated region
        $region21: #{tpu_custom_call.1} parent=11 // pred_check
          %p171 = pneg %p103
        $region22: #{tpu_custom_call.1} parent=11 // pred_check_branch
          %173 = sbr.rel (%p171) target = $region24
        $region23: #{tpu_custom_call.1} parent=11 // pred_region
          _
        $region24: #{tpu_custom_call.1} parent=11 // pred_fallthru
          _
        // Predicated region
        $region25: #{tpu_custom_call.1} parent=11 // pred_check
          %p174 = pneg %p124
        $region26: #{tpu_custom_call.1} parent=11 // pred_check_branch
          %176 = sbr.rel (%p174) target = $region28
        $region27: #{tpu_custom_call.1} parent=11 // pred_region
          _
        $region28: #{tpu_custom_call.1} parent=11 // pred_fallthru
          _
      $region12: #{tpu_custom_call.1} parent=5 // pred_fallthru
        _
      %p177 = scmp.lt.s32.totalorder %s14, 2
      // Predicated region
      $region29: #{tpu_custom_call.1} parent=5 // pred_check
        %p178 = pneg %p177
      $region30: #{tpu_custom_call.1} parent=5 // pred_check_branch
        %180 = sbr.rel (%p178) target = $region32
      $region31: #{tpu_custom_call.1} parent=5 // pred_region
        // Predicated region
        $region33: #{tpu_custom_call.1} parent=31 // pred_check
          %p181 = pneg %p34
        $region34: #{tpu_custom_call.1} parent=31 // pred_check_branch
          %183 = sbr.rel (%p181) target = $region36
        $region35: #{tpu_custom_call.1} parent=31 // pred_region
          %s184 = smul.u32 8, %s14
          %p185 = scmp.lt.s32.totalorder %s184, 15
          %s186 = scalar_select %p185, %s184, 15
          %s187 = smul.addr %s186, 5
          %s188 = smul.addr %s187, 4
          %s189 = scalar_lea.vmem %s0, %s188
          %s190 = smul.u32 8, %s14
        $region36: #{tpu_custom_call.1} parent=31 // pred_fallthru
          _
      $region32: #{tpu_custom_call.1} parent=5 // pred_fallthru
        _
      %p191 = scmp.le.s32.totalorder 1, %s14
      %p192 = scmp.lt.s32.totalorder %s14, 3
      %p193 = pnand %p191, %p192
      %p194 = pneg %p193
      // Predicated region
      $region37: #{tpu_custom_call.1} parent=5 // pred_check
        _
      $region38: #{tpu_custom_call.1} parent=5 // pred_check_branch
        %196 = sbr.rel (%p193) target = $region40
      $region39: #{tpu_custom_call.1} parent=5 // pred_region
        %s197 = ssub.s32 %s14, 1
        %s198 = smul.u32 8, %s19
        %p199 = scmp.lt.s32.totalorder %s198, 15
        %s200 = scalar_select %p199, %s198, 15
        %s201 = smul.addr %s200, 5
        %s202 = smul.addr %s201, 4
        %s203 = scalar_lea.vmem %s0, %s202
        %p204 = pneg %p40
        %p205 = pneg %p37
        %p206 = pneg %p61
        %p207 = pneg %p58
        %p208 = pneg %p82
        %p209 = pneg %p79
        %p210 = pneg %p103
        %p211 = pneg %p100
        %p212 = pneg %p124
        %p213 = pneg %p121
        %p214 = pneg %p150
        %p215 = pneg %p147
        %s216 = sand.u32 %s137, 1
        %s217 = scalar_lea.sflag [#allocation3], %s216
        %s218 = sand.u32 %s137, 1
        %s219 = smul.addr %s218, 8
        %s220 = scalar_lea.vmem [#allocation2], %s219
        %s221 = smul.u32 8, %s19
        %p222 = scmp.lt.s32.totalorder %s221, 15
        %s223 = scalar_select %p222, %s221, 15
        %s224 = smul.addr %s223, 5
        %s225 = smul.addr %s224, 4
        %s226 = scalar_lea.vmem %s0, %s225
        %s227 = smul.u32 8, %s19
        %v229 = vld [vmem:[%s1] sm:$0xff]
        %v230 = vld [vmem:[%s1 + $0x8] sm:$0xf]
        %v231 = vld [vmem:[%s1 + $0xc] sm:$0xff]
        %v232 = vld [vmem:[%s1 + $0x14] sm:$0xf]
        %v233 = vld [vmem:[%s1 + $0x18] sm:$0xff]
        %v234 = vld [vmem:[%s1 + $0x20] sm:$0xf]
        %v235 = vld [vmem:[%s1 + $0x24] sm:$0xff]
        %v236 = vld [vmem:[%s1 + $0x2c] sm:$0xf]
        %v237 = vld [vmem:[%s1 + $0x30] sm:$0xff]
        %v238 = vld [vmem:[%s1 + $0x38] sm:$0xf]
        %v239 = vld [vmem:[%s1 + $0x3c] sm:$0xff]
        %v240 = vld [vmem:[%s1 + $0x44] sm:$0xf]
        %v241 = vld [vmem:[%s1 + $0x48] sm:$0xff]
        %v242 = vld [vmem:[%s1 + $0x50] sm:$0xf]
        %v243 = vld [vmem:[%s1 + $0x54] sm:$0xff]
        %v244 = vld [vmem:[%s1 + $0x5c] sm:$0xf]
        %v245 = vld [vmem:[%s1 + $0x60] sm:$0xff]
        %v246 = vld [vmem:[%s1 + $0x68] sm:$0xf]
        %v247 = vld [vmem:[%s1 + $0x6c] sm:$0xff]
        %v248 = vld [vmem:[%s1 + $0x74] sm:$0xf]
        %v249 = vld [vmem:[%s1 + $0x78] sm:$0xff]
        %v250 = vld [vmem:[%s1 + $0x80] sm:$0xf]
        %v251 = vld [vmem:[%s1 + $0x84] sm:$0xff]
        %v252 = vld [vmem:[%s1 + $0x8c] sm:$0xf]
        %v253 = vld [vmem:[%s1 + $0x90] sm:$0xff]
        %v254 = vld [vmem:[%s1 + $0x98] sm:$0xf]
        %v255 = vld [vmem:[%s1 + $0x9c] sm:$0xff]
        %v256 = vld [vmem:[%s1 + $0xa4] sm:$0xf]
        %v257 = vld [vmem:[%s1 + $0xa8] sm:$0xff]
        %v258 = vld [vmem:[%s1 + $0xb0] sm:$0xf]
        %v259 = vld [vmem:[%s1 + $0xb4] sm:$0xff]
        %v260 = vld [vmem:[%s1 + $0xbc] sm:$0xf]
        %v261 = vld [vmem:[%s1 + $0xc0] sm:$0xff]
        %v262 = vld [vmem:[%s1 + $0xc8] sm:$0xf]
        %v263 = vld [vmem:[%s1 + $0xcc] sm:$0xff]
        %v264 = vld [vmem:[%s1 + $0xd4] sm:$0xf]
        %v265 = vld [vmem:[%s1 + $0xd8] sm:$0xff]
        %v266 = vld [vmem:[%s1 + $0xe0] sm:$0xf]
        %v267 = vld [vmem:[%s1 + $0xe4] sm:$0xff]
        %v268 = vld [vmem:[%s1 + $0xec] sm:$0xf]
        %v269 = vld [vmem:[%s226] sm:$0xf]
        %v270 = vld [vmem:[%s226 + $0x4] sm:$0xf]
        %v271 = vld [vmem:[%s226 + $0x8] sm:$0xf]
        %v272 = vld [vmem:[%s226 + $0xc] sm:$0xf]
        %v273 = vld [vmem:[%s226 + $0x10] sm:$0x3]
        %v274 = vld [vmem:[%s226 + $0x14] sm:$0xf]
        %v275 = vld [vmem:[%s226 + $0x18] sm:$0xf]
        %v276 = vld [vmem:[%s226 + $0x1c] sm:$0xf]
        %v277 = vld [vmem:[%s226 + $0x20] sm:$0xf]
        %v278 = vld [vmem:[%s226 + $0x24] sm:$0x3]
        %v279 = vld [vmem:[%s226 + $0x28] sm:$0xf]
        %v280 = vld [vmem:[%s226 + $0x2c] sm:$0xf]
        %v281 = vld [vmem:[%s226 + $0x30] sm:$0xf]
        %v282 = vld [vmem:[%s226 + $0x34] sm:$0xf]
        %v283 = vld [vmem:[%s226 + $0x38] sm:$0x3]
        %v284 = vld [vmem:[%s226 + $0x3c] sm:$0xf]
        %v285 = vld [vmem:[%s226 + $0x40] sm:$0xf]
        %v286 = vld [vmem:[%s226 + $0x44] sm:$0xf]
        %v287 = vld [vmem:[%s226 + $0x48] sm:$0xf]
        %v288 = vld [vmem:[%s226 + $0x4c] sm:$0x3]
        %v289 = vld [vmem:[%s226 + $0x50] sm:$0xf]
        %v290 = vld [vmem:[%s226 + $0x54] sm:$0xf]
        %v291 = vld [vmem:[%s226 + $0x58] sm:$0xf]
        %v292 = vld [vmem:[%s226 + $0x5c] sm:$0xf]
        %v293 = vld [vmem:[%s226 + $0x60] sm:$0x3]
        %v294 = vld [vmem:[%s226 + $0x64] sm:$0xf]
        %v295 = vld [vmem:[%s226 + $0x68] sm:$0xf]
        %v296 = vld [vmem:[%s226 + $0x6c] sm:$0xf]
        %v297 = vld [vmem:[%s226 + $0x70] sm:$0xf]
        %v298 = vld [vmem:[%s226 + $0x74] sm:$0x3]
        %v299 = vld [vmem:[%s226 + $0x78] sm:$0xf]
        %v300 = vld [vmem:[%s226 + $0x7c] sm:$0xf]
        %v301 = vld [vmem:[%s226 + $0x80] sm:$0xf]
        %v302 = vld [vmem:[%s226 + $0x84] sm:$0xf]
        %v303 = vld [vmem:[%s226 + $0x88] sm:$0x3]
        %v304 = vld [vmem:[%s226 + $0x8c] sm:$0xf]
        %v305 = vld [vmem:[%s226 + $0x90] sm:$0xf]
        %v306 = vld [vmem:[%s226 + $0x94] sm:$0xf]
        %v307 = vld [vmem:[%s226 + $0x98] sm:$0xf]
        %v308 = vld [vmem:[%s226 + $0x9c] sm:$0x3]
        %v341 = vunpack.c.l.b16 %v269
        %v342 = vunpack.c.l.b16 %v270
        %v343 = vunpack.c.l.b16 %v271
        %v344 = vunpack.c.l.b16 %v272
        %v345 = vunpack.c.l.b16 %v274
        %v346 = vunpack.c.l.b16 %v275
        %v347 = vunpack.c.l.b16 %v276
        %v348 = vunpack.c.l.b16 %v277
        %v349 = vunpack.c.l.b16 %v279
        %v350 = vunpack.c.l.b16 %v280
        %v351 = vunpack.c.l.b16 %v281
        %v352 = vunpack.c.l.b16 %v282
        %v353 = vunpack.c.l.b16 %v284
        %v354 = vunpack.c.l.b16 %v285
        %v355 = vunpack.c.l.b16 %v286
        %v356 = vunpack.c.l.b16 %v287
        %v357 = vunpack.c.l.b16 %v289
        %v358 = vunpack.c.l.b16 %v290
        %v359 = vunpack.c.l.b16 %v291
        %v360 = vunpack.c.l.b16 %v292
        %v361 = vunpack.c.l.b16 %v294
        %v362 = vunpack.c.l.b16 %v295
        %v363 = vunpack.c.l.b16 %v296
        %v364 = vunpack.c.l.b16 %v297
        %v365 = vunpack.c.l.b16 %v299
        %v366 = vunpack.c.l.b16 %v300
        %v367 = vunpack.c.l.b16 %v301
        %v368 = vunpack.c.l.b16 %v302
        %v369 = vunpack.c.l.b16 %v304
        %v370 = vunpack.c.l.b16 %v305
        %v371 = vunpack.c.l.b16 %v306
        %v372 = vunpack.c.l.b16 %v307
        %v373 = vpack.c.b16 %v342, %v341
        %v374 = vpack.c.b16 %v344, %v343
        %v375 = vpack.c.b16 %v346, %v345
        %v376 = vpack.c.b16 %v348, %v347
        %v377 = vpack.c.b16 %v350, %v349
        %v378 = vpack.c.b16 %v352, %v351
        %v379 = vpack.c.b16 %v354, %v353
        %v380 = vpack.c.b16 %v356, %v355
        %v381 = vpack.c.b16 %v358, %v357
        %v382 = vpack.c.b16 %v360, %v359
        %v383 = vpack.c.b16 %v362, %v361
        %v384 = vpack.c.b16 %v364, %v363
        %v385 = vpack.c.b16 %v366, %v365
        %v386 = vpack.c.b16 %v368, %v367
        %v387 = vpack.c.b16 %v370, %v369
        %v388 = vpack.c.b16 %v372, %v371
        %v397 = vunpack.c.l.b16 %v273
        %v398 = vunpack.c.l.b16 %v278
        %v399 = vunpack.c.l.b16 %v283
        %v400 = vunpack.c.l.b16 %v288
        %v401 = vunpack.c.l.b16 %v293
        %v402 = vunpack.c.l.b16 %v298
        %v403 = vunpack.c.l.b16 %v303
        %v404 = vunpack.c.l.b16 %v308
        %v405 = vpack.c.b16 %v397, %v397
        %v406 = vpack.c.b16 %v398, %v398
        %v407 = vpack.c.b16 %v399, %v399
        %v408 = vpack.c.b16 %v400, %v400
        %v409 = vpack.c.b16 %v401, %v401
        %v410 = vpack.c.b16 %v402, %v402
        %v411 = vpack.c.b16 %v403, %v403
        %v412 = vpack.c.b16 %v404, %v404
        %vm413 = vsmask.f32 7424
        %v415 = vshrl.u32 %v373, 16
        %v417 = vshll.u32 %v373, 16
        %v419 = vrot.slane %v417, 1
        %v420 = vor.u32 %v415, %v419
        %v422 = vshll.u32 %v374, 16
        %v424 = vrot.slane %v422, 1
        %v425 = vsel %vm413, %v420, %v424
        %v426 = vshrl.u32 %v374, 16
        %v428 = vor.u32 %v426, %v424
        %v430 = vshll.u32 %v405, 16
        %v432 = vrot.slane %v430, 1
        %v433 = vsel %vm413, %v428, %v432
        %v435 = vshrl.u32 %v375, 16
        %v437 = vshll.u32 %v375, 16
        %v439 = vrot.slane %v437, 1
        %v440 = vor.u32 %v435, %v439
        %v442 = vshll.u32 %v376, 16
        %v444 = vrot.slane %v442, 1
        %v445 = vsel %vm413, %v440, %v444
        %v446 = vshrl.u32 %v376, 16
        %v448 = vor.u32 %v446, %v444
        %v450 = vshll.u32 %v406, 16
        %v452 = vrot.slane %v450, 1
        %v453 = vsel %vm413, %v448, %v452
        %v455 = vshrl.u32 %v377, 16
        %v457 = vshll.u32 %v377, 16
        %v459 = vrot.slane %v457, 1
        %v460 = vor.u32 %v455, %v459
        %v462 = vshll.u32 %v378, 16
        %v464 = vrot.slane %v462, 1
        %v465 = vsel %vm413, %v460, %v464
        %v466 = vshrl.u32 %v378, 16
        %v468 = vor.u32 %v466, %v464
        %v470 = vshll.u32 %v407, 16
        %v472 = vrot.slane %v470, 1
        %v473 = vsel %vm413, %v468, %v472
        %v475 = vshrl.u32 %v379, 16
        %v477 = vshll.u32 %v379, 16
        %v479 = vrot.slane %v477, 1
        %v480 = vor.u32 %v475, %v479
        %v482 = vshll.u32 %v380, 16
        %v484 = vrot.slane %v482, 1
        %v485 = vsel %vm413, %v480, %v484
        %v486 = vshrl.u32 %v380, 16
        %v488 = vor.u32 %v486, %v484
        %v490 = vshll.u32 %v408, 16
        %v492 = vrot.slane %v490, 1
        %v493 = vsel %vm413, %v488, %v492
        %v495 = vshrl.u32 %v381, 16
        %v497 = vshll.u32 %v381, 16
        %v499 = vrot.slane %v497, 1
        %v500 = vor.u32 %v495, %v499
        %v502 = vshll.u32 %v382, 16
        %v504 = vrot.slane %v502, 1
        %v505 = vsel %vm413, %v500, %v504
        %v506 = vshrl.u32 %v382, 16
        %v508 = vor.u32 %v506, %v504
        %v510 = vshll.u32 %v409, 16
        %v512 = vrot.slane %v510, 1
        %v513 = vsel %vm413, %v508, %v512
        %v515 = vshrl.u32 %v383, 16
        %v517 = vshll.u32 %v383, 16
        %v519 = vrot.slane %v517, 1
        %v520 = vor.u32 %v515, %v519
        %v522 = vshll.u32 %v384, 16
        %v524 = vrot.slane %v522, 1
        %v525 = vsel %vm413, %v520, %v524
        %v526 = vshrl.u32 %v384, 16
        %v528 = vor.u32 %v526, %v524
        %v530 = vshll.u32 %v410, 16
        %v532 = vrot.slane %v530, 1
        %v533 = vsel %vm413, %v528, %v532
        %v535 = vshrl.u32 %v385, 16
        %v537 = vshll.u32 %v385, 16
        %v539 = vrot.slane %v537, 1
        %v540 = vor.u32 %v535, %v539
        %v542 = vshll.u32 %v386, 16
        %v544 = vrot.slane %v542, 1
        %v545 = vsel %vm413, %v540, %v544
        %v546 = vshrl.u32 %v386, 16
        %v548 = vor.u32 %v546, %v544
        %v550 = vshll.u32 %v411, 16
        %v552 = vrot.slane %v550, 1
        %v553 = vsel %vm413, %v548, %v552
        %v555 = vshrl.u32 %v387, 16
        %v557 = vshll.u32 %v387, 16
        %v559 = vrot.slane %v557, 1
        %v560 = vor.u32 %v555, %v559
        %v562 = vshll.u32 %v388, 16
        %v564 = vrot.slane %v562, 1
        %v565 = vsel %vm413, %v560, %v564
        %v566 = vshrl.u32 %v388, 16
        %v568 = vor.u32 %v566, %v564
        %v570 = vshll.u32 %v412, 16
        %v572 = vrot.slane %v570, 1
        %v573 = vsel %vm413, %v568, %v572
        %574 = vrot.lane.b32.xlu0 %v425, 32
        %v575 = vpop.permute.xlu0 %574
        %576 = vrot.lane.b32.xlu0 %v433, 32
        %v577 = vpop.permute.xlu0 %576
        %578 = vrot.lane.b32.xlu0 %v445, 32
        %v579 = vpop.permute.xlu0 %578
        %580 = vrot.lane.b32.xlu0 %v453, 32
        %v581 = vpop.permute.xlu0 %580
        %582 = vrot.lane.b32.xlu0 %v465, 32
        %v583 = vpop.permute.xlu0 %582
        %584 = vrot.lane.b32.xlu0 %v473, 32
        %v585 = vpop.permute.xlu0 %584
        %586 = vrot.lane.b32.xlu0 %v485, 32
        %v587 = vpop.permute.xlu0 %586
        %588 = vrot.lane.b32.xlu0 %v493, 32
        %v589 = vpop.permute.xlu0 %588
        %590 = vrot.lane.b32.xlu0 %v505, 32
        %v591 = vpop.permute.xlu0 %590
        %592 = vrot.lane.b32.xlu0 %v513, 32
        %v593 = vpop.permute.xlu0 %592
        %594 = vrot.lane.b32.xlu0 %v525, 32
        %v595 = vpop.permute.xlu0 %594
        %596 = vrot.lane.b32.xlu0 %v533, 32
        %v597 = vpop.permute.xlu0 %596
        %598 = vrot.lane.b32.xlu0 %v545, 32
        %v599 = vpop.permute.xlu0 %598
        %600 = vrot.lane.b32.xlu0 %v553, 32
        %v601 = vpop.permute.xlu0 %600
        %602 = vrot.lane.b32.xlu0 %v565, 32
        %v603 = vpop.permute.xlu0 %602
        %604 = vrot.lane.b32.xlu0 %v573, 32
        %v605 = vpop.permute.xlu0 %604
        %vm606 = vcmask 1046528
        %v607 = vrot.slane %v373, 1
        %v608 = vrot.slane %v374, 1
        %v609 = vsel %vm606, %v607, %v608
        %v610 = vrot.slane %v405, 1
        %v611 = vsel %vm606, %v608, %v610
        %v612 = vrot.slane %v375, 1
        %v613 = vrot.slane %v376, 1
        %v614 = vsel %vm606, %v612, %v613
        %v615 = vrot.slane %v406, 1
        %v616 = vsel %vm606, %v613, %v615
        %v617 = vrot.slane %v377, 1
        %v618 = vrot.slane %v378, 1
        %v619 = vsel %vm606, %v617, %v618
        %v620 = vrot.slane %v407, 1
        %v621 = vsel %vm606, %v618, %v620
        %v622 = vrot.slane %v379, 1
        %v623 = vrot.slane %v380, 1
        %v624 = vsel %vm606, %v622, %v623
        %v625 = vrot.slane %v408, 1
        %v626 = vsel %vm606, %v623, %v625
        %v627 = vrot.slane %v381, 1
        %v628 = vrot.slane %v382, 1
        %v629 = vsel %vm606, %v627, %v628
        %v630 = vrot.slane %v409, 1
        %v631 = vsel %vm606, %v628, %v630
        %v632 = vrot.slane %v383, 1
        %v633 = vrot.slane %v384, 1
        %v634 = vsel %vm606, %v632, %v633
        %v635 = vrot.slane %v410, 1
        %v636 = vsel %vm606, %v633, %v635
        %v637 = vrot.slane %v385, 1
        %v638 = vrot.slane %v386, 1
        %v639 = vsel %vm606, %v637, %v638
        %v640 = vrot.slane %v411, 1
        %v641 = vsel %vm606, %v638, %v640
        %v642 = vrot.slane %v387, 1
        %v643 = vrot.slane %v388, 1
        %v644 = vsel %vm606, %v642, %v643
        %v645 = vrot.slane %v412, 1
        %v646 = vsel %vm606, %v643, %v645
        %647 = vrot.lane.b32.xlu0 %v609, 64
        %v648 = vpop.permute.xlu0 %647
        %649 = vrot.lane.b32.xlu0 %v611, 64
        %v650 = vpop.permute.xlu0 %649
        %651 = vrot.lane.b32.xlu0 %v614, 64
        %v652 = vpop.permute.xlu0 %651
        %653 = vrot.lane.b32.xlu0 %v616, 64
        %v654 = vpop.permute.xlu0 %653
        %655 = vrot.lane.b32.xlu0 %v619, 64
        %v656 = vpop.permute.xlu0 %655
        %657 = vrot.lane.b32.xlu0 %v621, 64
        %v658 = vpop.permute.xlu0 %657
        %659 = vrot.lane.b32.xlu0 %v624, 64
        %v660 = vpop.permute.xlu0 %659
        %661 = vrot.lane.b32.xlu0 %v626, 64
        %v662 = vpop.permute.xlu0 %661
        %663 = vrot.lane.b32.xlu0 %v629, 64
        %v664 = vpop.permute.xlu0 %663
        %665 = vrot.lane.b32.xlu0 %v631, 64
        %v666 = vpop.permute.xlu0 %665
        %667 = vrot.lane.b32.xlu0 %v634, 64
        %v668 = vpop.permute.xlu0 %667
        %669 = vrot.lane.b32.xlu0 %v636, 64
        %v670 = vpop.permute.xlu0 %669
        %671 = vrot.lane.b32.xlu0 %v639, 64
        %v672 = vpop.permute.xlu0 %671
        %673 = vrot.lane.b32.xlu0 %v641, 64
        %v674 = vpop.permute.xlu0 %673
        %675 = vrot.lane.b32.xlu0 %v644, 64
        %v676 = vpop.permute.xlu0 %675
        %677 = vrot.lane.b32.xlu0 %v646, 64
        %v678 = vpop.permute.xlu0 %677
        %vm679 = vsmask.f32 6400
        %v680 = vrot.slane %v415, 1
        %v681 = vrot.slane %v417, 2
        %v682 = vor.u32 %v680, %v681
        %v683 = vrot.slane %v426, 1
        %v684 = vrot.slane %v422, 2
        %v685 = vor.u32 %v683, %v684
        %v686 = vsel %vm679, %v682, %v685
        %v687 = vshrl.u32 %v405, 16
        %v689 = vrot.slane %v687, 1
        %v690 = vrot.slane %v430, 2
        %v691 = vor.u32 %v689, %v690
        %v692 = vsel %vm679, %v685, %v691
        %v693 = vrot.slane %v435, 1
        %v694 = vrot.slane %v437, 2
        %v695 = vor.u32 %v693, %v694
        %v696 = vrot.slane %v446, 1
        %v697 = vrot.slane %v442, 2
        %v698 = vor.u32 %v696, %v697
        %v699 = vsel %vm679, %v695, %v698
        %v700 = vshrl.u32 %v406, 16
        %v702 = vrot.slane %v700, 1
        %v703 = vrot.slane %v450, 2
        %v704 = vor.u32 %v702, %v703
        %v705 = vsel %vm679, %v698, %v704
        %v706 = vrot.slane %v455, 1
        %v707 = vrot.slane %v457, 2
        %v708 = vor.u32 %v706, %v707
        %v709 = vrot.slane %v466, 1
        %v710 = vrot.slane %v462, 2
        %v711 = vor.u32 %v709, %v710
        %v712 = vsel %vm679, %v708, %v711
        %v713 = vshrl.u32 %v407, 16
        %v715 = vrot.slane %v713, 1
        %v716 = vrot.slane %v470, 2
        %v717 = vor.u32 %v715, %v716
        %v718 = vsel %vm679, %v711, %v717
        %v719 = vrot.slane %v475, 1
        %v720 = vrot.slane %v477, 2
        %v721 = vor.u32 %v719, %v720
        %v722 = vrot.slane %v486, 1
        %v723 = vrot.slane %v482, 2
        %v724 = vor.u32 %v722, %v723
        %v725 = vsel %vm679, %v721, %v724
        %v726 = vshrl.u32 %v408, 16
        %v728 = vrot.slane %v726, 1
        %v729 = vrot.slane %v490, 2
        %v730 = vor.u32 %v728, %v729
        %v731 = vsel %vm679, %v724, %v730
        %v732 = vrot.slane %v495, 1
        %v733 = vrot.slane %v497, 2
        %v734 = vor.u32 %v732, %v733
        %v735 = vrot.slane %v506, 1
        %v736 = vrot.slane %v502, 2
        %v737 = vor.u32 %v735, %v736
        %v738 = vsel %vm679, %v734, %v737
        %v739 = vshrl.u32 %v409, 16
        %v741 = vrot.slane %v739, 1
        %v742 = vrot.slane %v510, 2
        %v743 = vor.u32 %v741, %v742
        %v744 = vsel %vm679, %v737, %v743
        %v745 = vrot.slane %v515, 1
        %v746 = vrot.slane %v517, 2
        %v747 = vor.u32 %v745, %v746
        %v748 = vrot.slane %v526, 1
        %v749 = vrot.slane %v522, 2
        %v750 = vor.u32 %v748, %v749
        %v751 = vsel %vm679, %v747, %v750
        %v752 = vshrl.u32 %v410, 16
        %v754 = vrot.slane %v752, 1
        %v755 = vrot.slane %v530, 2
        %v756 = vor.u32 %v754, %v755
        %v757 = vsel %vm679, %v750, %v756
        %v758 = vrot.slane %v535, 1
        %v759 = vrot.slane %v537, 2
        %v760 = vor.u32 %v758, %v759
        %v761 = vrot.slane %v546, 1
        %v762 = vrot.slane %v542, 2
        %v763 = vor.u32 %v761, %v762
        %v764 = vsel %vm679, %v760, %v763
        %v765 = vshrl.u32 %v411, 16
        %v767 = vrot.slane %v765, 1
        %v768 = vrot.slane %v550, 2
        %v769 = vor.u32 %v767, %v768
        %v770 = vsel %vm679, %v763, %v769
        %v771 = vrot.slane %v555, 1
        %v772 = vrot.slane %v557, 2
        %v773 = vor.u32 %v771, %v772
        %v774 = vrot.slane %v566, 1
        %v775 = vrot.slane %v562, 2
        %v776 = vor.u32 %v774, %v775
        %v777 = vsel %vm679, %v773, %v776
        %v778 = vshrl.u32 %v412, 16
        %v780 = vrot.slane %v778, 1
        %v781 = vrot.slane %v570, 2
        %v782 = vor.u32 %v780, %v781
        %v783 = vsel %vm679, %v776, %v782
        %784 = vrot.lane.b32.xlu0 %v686, 96
        %v785 = vpop.permute.xlu0 %784
        %786 = vrot.lane.b32.xlu0 %v692, 96
        %v787 = vpop.permute.xlu0 %786
        %788 = vrot.lane.b32.xlu0 %v699, 96
        %v789 = vpop.permute.xlu0 %788
        %790 = vrot.lane.b32.xlu0 %v705, 96
        %v791 = vpop.permute.xlu0 %790
        %792 = vrot.lane.b32.xlu0 %v712, 96
        %v793 = vpop.permute.xlu0 %792
        %794 = vrot.lane.b32.xlu0 %v718, 96
        %v795 = vpop.permute.xlu0 %794
        %796 = vrot.lane.b32.xlu0 %v725, 96
        %v797 = vpop.permute.xlu0 %796
        %798 = vrot.lane.b32.xlu0 %v731, 96
        %v799 = vpop.permute.xlu0 %798
        %800 = vrot.lane.b32.xlu0 %v738, 96
        %v801 = vpop.permute.xlu0 %800
        %802 = vrot.lane.b32.xlu0 %v744, 96
        %v803 = vpop.permute.xlu0 %802
        %804 = vrot.lane.b32.xlu0 %v751, 96
        %v805 = vpop.permute.xlu0 %804
        %806 = vrot.lane.b32.xlu0 %v757, 96
        %v807 = vpop.permute.xlu0 %806
        %808 = vrot.lane.b32.xlu0 %v764, 96
        %v809 = vpop.permute.xlu0 %808
        %810 = vrot.lane.b32.xlu0 %v770, 96
        %v811 = vpop.permute.xlu0 %810
        %812 = vrot.lane.b32.xlu0 %v777, 96
        %v813 = vpop.permute.xlu0 %812
        %814 = vrot.lane.b32.xlu0 %v783, 96
        %v815 = vpop.permute.xlu0 %814
        %vm816 = vcmask 1045504
        %v817 = vrot.slane %v373, 2
        %v818 = vrot.slane %v374, 2
        %v819 = vsel %vm816, %v817, %v818
        %v820 = vrot.slane %v405, 2
        %v821 = vsel %vm816, %v818, %v820
        %v822 = vrot.slane %v375, 2
        %v823 = vrot.slane %v376, 2
        %v824 = vsel %vm816, %v822, %v823
        %v825 = vrot.slane %v406, 2
        %v826 = vsel %vm816, %v823, %v825
        %v827 = vrot.slane %v377, 2
        %v828 = vrot.slane %v378, 2
        %v829 = vsel %vm816, %v827, %v828
        %v830 = vrot.slane %v407, 2
        %v831 = vsel %vm816, %v828, %v830
        %v832 = vrot.slane %v379, 2
        %v833 = vrot.slane %v380, 2
        %v834 = vsel %vm816, %v832, %v833
        %v835 = vrot.slane %v408, 2
        %v836 = vsel %vm816, %v833, %v835
        %v837 = vrot.slane %v381, 2
        %v838 = vrot.slane %v382, 2
        %v839 = vsel %vm816, %v837, %v838
        %v840 = vrot.slane %v409, 2
        %v841 = vsel %vm816, %v838, %v840
        %v842 = vrot.slane %v383, 2
        %v843 = vrot.slane %v384, 2
        %v844 = vsel %vm816, %v842, %v843
        %v845 = vrot.slane %v410, 2
        %v846 = vsel %vm816, %v843, %v845
        %v847 = vrot.slane %v385, 2
        %v848 = vrot.slane %v386, 2
        %v849 = vsel %vm816, %v847, %v848
        %v850 = vrot.slane %v411, 2
        %v851 = vsel %vm816, %v848, %v850
        %v852 = vrot.slane %v387, 2
        %v853 = vrot.slane %v388, 2
        %v854 = vsel %vm816, %v852, %v853
        %v855 = vrot.slane %v412, 2
        %v856 = vsel %vm816, %v853, %v855
        %vm857 = vcmask 261120
        %v859 = vsel %vm857, %v373, %v575
        %v861 = vsel %vm857, %v374, %v577
        %v863 = vsel %vm857, %v375, %v579
        %v865 = vsel %vm857, %v376, %v581
        %v867 = vsel %vm857, %v377, %v583
        %v869 = vsel %vm857, %v378, %v585
        %v871 = vsel %vm857, %v379, %v587
        %v873 = vsel %vm857, %v380, %v589
        %v875 = vsel %vm857, %v381, %v591
        %v877 = vsel %vm857, %v382, %v593
        %v879 = vsel %vm857, %v383, %v595
        %v881 = vsel %vm857, %v384, %v597
        %v883 = vsel %vm857, %v385, %v599
        %v885 = vsel %vm857, %v386, %v601
        %v887 = vsel %vm857, %v387, %v603
        %v889 = vsel %vm857, %v388, %v605
        %vm890 = vcmask 523264
        %v892 = vsel %vm890, %v859, %v648
        %v894 = vsel %vm890, %v861, %v650
        %v896 = vsel %vm890, %v863, %v652
        %v898 = vsel %vm890, %v865, %v654
        %v900 = vsel %vm890, %v867, %v656
        %v902 = vsel %vm890, %v869, %v658
        %v904 = vsel %vm890, %v871, %v660
        %v906 = vsel %vm890, %v873, %v662
        %v908 = vsel %vm890, %v875, %v664
        %v910 = vsel %vm890, %v877, %v666
        %v912 = vsel %vm890, %v879, %v668
        %v914 = vsel %vm890, %v881, %v670
        %v916 = vsel %vm890, %v883, %v672
        %v918 = vsel %vm890, %v885, %v674
        %v920 = vsel %vm890, %v887, %v676
        %v922 = vsel %vm890, %v889, %v678
        %vm923 = vcmask 785408
        %v925 = vsel %vm923, %v892, %v785
        %v928 = vsel %vm923, %v894, %v787
        %v931 = vsel %vm923, %v896, %v789
        %v934 = vsel %vm923, %v898, %v791
        %v937 = vsel %vm923, %v900, %v793
        %v940 = vsel %vm923, %v902, %v795
        %v943 = vsel %vm923, %v904, %v797
        %v946 = vsel %vm923, %v906, %v799
        %v949 = vsel %vm923, %v908, %v801
        %v952 = vsel %vm923, %v910, %v803
        %v955 = vsel %vm923, %v912, %v805
        %v958 = vsel %vm923, %v914, %v807
        %v961 = vsel %vm923, %v916, %v809
        %v964 = vsel %vm923, %v918, %v811
        %v967 = vsel %vm923, %v920, %v813
        %v970 = vsel %vm923, %v922, %v815
        %v1012 = vunpack.c.l.b16 %v229
        %v1013 = vunpack.c.h.b16 %v229
        %v1014 = vunpack.c.l.b16 %v230
        %v1015 = vunpack.c.l.b16 %v231
        %v1016 = vunpack.c.h.b16 %v231
        %v1017 = vunpack.c.l.b16 %v232
        %v1018 = vunpack.c.l.b16 %v233
        %v1019 = vunpack.c.h.b16 %v233
        %v1020 = vunpack.c.l.b16 %v234
        %v1021 = vunpack.c.l.b16 %v235
        %v1022 = vunpack.c.h.b16 %v235
        %v1023 = vunpack.c.l.b16 %v236
        %v1024 = vunpack.c.l.b16 %v237
        %v1025 = vunpack.c.h.b16 %v237
        %v1026 = vunpack.c.l.b16 %v238
        %v1027 = vunpack.c.l.b16 %v239
        %v1028 = vunpack.c.h.b16 %v239
        %v1029 = vunpack.c.l.b16 %v240
        %v1030 = vunpack.c.l.b16 %v241
        %v1031 = vunpack.c.h.b16 %v241
        %v1032 = vunpack.c.l.b16 %v242
        %v1033 = vunpack.c.l.b16 %v243
        %v1034 = vunpack.c.h.b16 %v243
        %v1035 = vunpack.c.l.b16 %v244
        %v1036 = vunpack.c.l.b16 %v245
        %v1037 = vunpack.c.h.b16 %v245
        %v1038 = vunpack.c.l.b16 %v246
        %v1039 = vunpack.c.l.b16 %v247
        %v1040 = vunpack.c.h.b16 %v247
        %v1041 = vunpack.c.l.b16 %v248
        %v1042 = vunpack.c.l.b16 %v249
        %v1043 = vunpack.c.h.b16 %v249
        %v1044 = vunpack.c.l.b16 %v250
        %v1045 = vunpack.c.l.b16 %v251
        %v1046 = vunpack.c.h.b16 %v251
        %v1047 = vunpack.c.l.b16 %v252
        %v1048 = vunpack.c.l.b16 %v253
        %v1049 = vunpack.c.h.b16 %v253
        %v1050 = vunpack.c.l.b16 %v254
        %v1051 = vunpack.c.l.b16 %v255
        %v1052 = vunpack.c.h.b16 %v255
        %v1053 = vunpack.c.l.b16 %v256
        %v1054 = vunpack.c.l.b16 %v257
        %v1055 = vunpack.c.h.b16 %v257
        %v1056 = vunpack.c.l.b16 %v258
        %v1057 = vunpack.c.l.b16 %v259
        %v1058 = vunpack.c.h.b16 %v259
        %v1059 = vunpack.c.l.b16 %v260
        %v1060 = vunpack.c.l.b16 %v261
        %v1061 = vunpack.c.h.b16 %v261
        %v1062 = vunpack.c.l.b16 %v262
        %v1063 = vunpack.c.l.b16 %v263
        %v1064 = vunpack.c.h.b16 %v263
        %v1065 = vunpack.c.l.b16 %v264
        %v1066 = vunpack.c.l.b16 %v265
        %v1067 = vunpack.c.h.b16 %v265
        %v1068 = vunpack.c.l.b16 %v266
        %v1069 = vunpack.c.l.b16 %v267
        %v1070 = vunpack.c.h.b16 %v267
        %v1071 = vunpack.c.l.b16 %v268
        %v1072 = vpack.c.b16 %v1015, %v1012
        %v1073 = vpack.c.b16 %v1016, %v1013
        %v1074 = vpack.c.b16 %v1017, %v1014
        %v1075 = vpack.c.b16 %v1021, %v1018
        %v1076 = vpack.c.b16 %v1022, %v1019
        %v1077 = vpack.c.b16 %v1023, %v1020
        %v1078 = vpack.c.b16 %v1027, %v1024
        %v1079 = vpack.c.b16 %v1028, %v1025
        %v1080 = vpack.c.b16 %v1029, %v1026
        %v1081 = vpack.c.b16 %v1033, %v1030
        %v1082 = vpack.c.b16 %v1034, %v1031
        %v1083 = vpack.c.b16 %v1035, %v1032
        %v1084 = vpack.c.b16 %v1039, %v1036
        %v1085 = vpack.c.b16 %v1040, %v1037
        %v1086 = vpack.c.b16 %v1041, %v1038
        %v1087 = vpack.c.b16 %v1045, %v1042
        %v1088 = vpack.c.b16 %v1046, %v1043
        %v1089 = vpack.c.b16 %v1047, %v1044
        %v1090 = vpack.c.b16 %v1051, %v1048
        %v1091 = vpack.c.b16 %v1052, %v1049
        %v1092 = vpack.c.b16 %v1053, %v1050
        %v1093 = vpack.c.b16 %v1057, %v1054
        %v1094 = vpack.c.b16 %v1058, %v1055
        %v1095 = vpack.c.b16 %v1059, %v1056
        %v1096 = vpack.c.b16 %v1063, %v1060
        %v1097 = vpack.c.b16 %v1064, %v1061
        %v1098 = vpack.c.b16 %v1065, %v1062
        %v1099 = vpack.c.b16 %v1069, %v1066
        %v1100 = vpack.c.b16 %v1070, %v1067
        %v1101 = vpack.c.b16 %v1071, %v1068
        %v1133 = vsel %vm857, %v819, 0
        %v1136 = vsel %vm857, %v821, 0
        %v1139 = vsel %vm857, %v824, 0
        %v1142 = vsel %vm857, %v826, 0
        %v1145 = vsel %vm857, %v829, 0
        %v1148 = vsel %vm857, %v831, 0
        %v1151 = vsel %vm857, %v834, 0
        %v1154 = vsel %vm857, %v836, 0
        %v1157 = vsel %vm857, %v839, 0
        %v1160 = vsel %vm857, %v841, 0
        %v1163 = vsel %vm857, %v844, 0
        %v1166 = vsel %vm857, %v846, 0
        %v1169 = vsel %vm857, %v849, 0
        %v1172 = vsel %vm857, %v851, 0
        %v1175 = vsel %vm857, %v854, 0
        %v1178 = vsel %vm857, %v856, 0
        %1180 = vmatprep.subr.bf16.mxu0 %v1094
        %1181 = vmatpush1.bf16.msra.mxu0 %v1093
        %1182 = vmatprep.subr.bf16.mxu0 %v1091
        %1183 = vmatpush1.bf16.msra.mxu0 %v1090
        %1184 = vmatprep.subr.bf16.mxu0 %v1088
        %1185 = vmatpush1.bf16.msra.mxu0 %v1087
        %1186 = vmatprep.subr.bf16.mxu0 %v1085
        %1187 = vmatpush1.bf16.msra.mxu0 %v1084
        %1188 = vmatprep.subr.bf16.mxu0 %v1082
        %1189 = vmatpush1.bf16.msra.mxu0 %v1081
        %1190 = vmatprep.subr.bf16.mxu0 %v1079
        %1191 = vmatpush1.bf16.msra.mxu0 %v1078
        %1192 = vmatprep.subr.bf16.mxu0 %v1076
        %1193 = vmatpush1.bf16.msra.mxu0 %v1075
        %1194 = vmatprep.subr.bf16.mxu0 %v1073
        %1195 = vmatpush1.bf16.msra.mxu0 %v1072
        %1196 = vmatprep.subr.bf16.mxu0 0
        %1197 = vmatpush2.bf16.msra.mxu0 0
        %1198 = vmatprep.subr.bf16.mxu0 0
        %1199 = vmatpush2.bf16.msra.mxu0 0
        %1200 = vmatprep.subr.bf16.mxu0 0
        %1201 = vmatpush2.bf16.msra.mxu0 0
        %1202 = vmatprep.subr.bf16.mxu0 0
        %1203 = vmatpush2.bf16.msra.mxu0 0
        %1204 = vmatprep.subr.bf16.mxu0 0
        %1205 = vmatpush2.bf16.msra.mxu0 0
        %1206 = vmatprep.subr.bf16.mxu0 0
        %1207 = vmatpush2.bf16.msra.mxu0 0
        %1208 = vmatprep.subr.bf16.mxu0 %v1100
        %1209 = vmatpush2.bf16.msra.mxu0 %v1099
        %1210 = vmatprep.subr.bf16.mxu0 %v1097
        %1211 = vmatpush2.bf16.msra.mxu0 %v1096
        %1212 = vmatprep.mubr.bf16.mxu0 %v1133
        %1213 = vmatmul.mubr.bf16.gmra.mxu0 %v925
        %v1214 = vpop.f32.mrf.mxu0
        %v1215 = vadd.f32 0.0, %v1214
        %v1216 = vpop.f32.mrf.mxu0
        %v1217 = vadd.f32 0.0, %v1216
        %v1218 = vpop.f32.mrf.mxu0
        %v1219 = vadd.f32 0.0, %v1218
        %v1220 = vpop.f32.mrf.mxu0
        %v1221 = vadd.f32 0.0, %v1220
        %1222 = vmatprep.mubr.bf16.mxu0 %v1136
        %1223 = vmatmul.mubr.bf16.gmra.mxu0 %v928
        %v1224 = vpop.f32.mrf.mxu0
        %v1225 = vadd.f32 0.0, %v1224
        %v1226 = vpop.f32.mrf.mxu0
        %v1227 = vadd.f32 0.0, %v1226
        %v1228 = vpop.f32.mrf.mxu0
        %v1229 = vadd.f32 0.0, %v1228
        %v1230 = vpop.f32.mrf.mxu0
        %v1231 = vadd.f32 0.0, %v1230
        %1232 = vmatprep.mubr.bf16.mxu0 %v1139
        %1233 = vmatmul.mubr.bf16.gmra.mxu0 %v931
        %v1234 = vpop.f32.mrf.mxu0
        %v1235 = vadd.f32 0.0, %v1234
        %v1236 = vpop.f32.mrf.mxu0
        %v1237 = vadd.f32 0.0, %v1236
        %v1238 = vpop.f32.mrf.mxu0
        %v1239 = vadd.f32 0.0, %v1238
        %v1240 = vpop.f32.mrf.mxu0
        %v1241 = vadd.f32 0.0, %v1240
        %1242 = vmatprep.mubr.bf16.mxu0 %v1142
        %1243 = vmatmul.mubr.bf16.gmra.mxu0 %v934
        %v1244 = vpop.f32.mrf.mxu0
        %v1245 = vadd.f32 0.0, %v1244
        %v1246 = vpop.f32.mrf.mxu0
        %v1247 = vadd.f32 0.0, %v1246
        %v1248 = vpop.f32.mrf.mxu0
        %v1249 = vadd.f32 0.0, %v1248
        %v1250 = vpop.f32.mrf.mxu0
        %v1251 = vadd.f32 0.0, %v1250
        %1252 = vmatprep.mubr.bf16.mxu0 %v1145
        %1253 = vmatmul.mubr.bf16.gmra.mxu0 %v937
        %v1254 = vpop.f32.mrf.mxu0
        %v1255 = vadd.f32 0.0, %v1254
        %v1256 = vpop.f32.mrf.mxu0
        %v1257 = vadd.f32 0.0, %v1256
        %v1258 = vpop.f32.mrf.mxu0
        %v1259 = vadd.f32 0.0, %v1258
        %v1260 = vpop.f32.mrf.mxu0
        %v1261 = vadd.f32 0.0, %v1260
        %1262 = vmatprep.mubr.bf16.mxu0 %v1148
        %1263 = vmatmul.mubr.bf16.gmra.mxu0 %v940
        %v1264 = vpop.f32.mrf.mxu0
        %v1265 = vadd.f32 0.0, %v1264
        %v1266 = vpop.f32.mrf.mxu0
        %v1267 = vadd.f32 0.0, %v1266
        %v1268 = vpop.f32.mrf.mxu0
        %v1269 = vadd.f32 0.0, %v1268
        %v1270 = vpop.f32.mrf.mxu0
        %v1271 = vadd.f32 0.0, %v1270
        %1272 = vmatprep.mubr.bf16.mxu0 %v1151
        %1273 = vmatmul.mubr.bf16.gmra.mxu0 %v943
        %v1274 = vpop.f32.mrf.mxu0
        %v1275 = vadd.f32 0.0, %v1274
        %v1276 = vpop.f32.mrf.mxu0
        %v1277 = vadd.f32 0.0, %v1276
        %v1278 = vpop.f32.mrf.mxu0
        %v1279 = vadd.f32 0.0, %v1278
        %v1280 = vpop.f32.mrf.mxu0
        %v1281 = vadd.f32 0.0, %v1280
        %1282 = vmatprep.mubr.bf16.mxu0 %v1154
        %1283 = vmatmul.mubr.bf16.gmra.mxu0 %v946
        %v1284 = vpop.f32.mrf.mxu0
        %v1285 = vadd.f32 0.0, %v1284
        %v1286 = vpop.f32.mrf.mxu0
        %v1287 = vadd.f32 0.0, %v1286
        %v1288 = vpop.f32.mrf.mxu0
        %v1289 = vadd.f32 0.0, %v1288
        %v1290 = vpop.f32.mrf.mxu0
        %v1291 = vadd.f32 0.0, %v1290
        %1292 = vmatprep.mubr.bf16.mxu0 %v1157
        %1293 = vmatmul.mubr.bf16.gmra.mxu0 %v949
        %v1294 = vpop.f32.mrf.mxu0
        %v1295 = vadd.f32 0.0, %v1294
        %v1296 = vpop.f32.mrf.mxu0
        %v1297 = vadd.f32 0.0, %v1296
        %v1298 = vpop.f32.mrf.mxu0
        %v1299 = vadd.f32 0.0, %v1298
        %v1300 = vpop.f32.mrf.mxu0
        %v1301 = vadd.f32 0.0, %v1300
        %1302 = vmatprep.mubr.bf16.mxu0 %v1160
        %1303 = vmatmul.mubr.bf16.gmra.mxu0 %v952
        %v1304 = vpop.f32.mrf.mxu0
        %v1305 = vadd.f32 0.0, %v1304
        %v1306 = vpop.f32.mrf.mxu0
        %v1307 = vadd.f32 0.0, %v1306
        %v1308 = vpop.f32.mrf.mxu0
        %v1309 = vadd.f32 0.0, %v1308
        %v1310 = vpop.f32.mrf.mxu0
        %v1311 = vadd.f32 0.0, %v1310
        %1312 = vmatprep.mubr.bf16.mxu0 %v1163
        %1313 = vmatmul.mubr.bf16.gmra.mxu0 %v955
        %v1314 = vpop.f32.mrf.mxu0
        %v1315 = vadd.f32 0.0, %v1314
        %v1316 = vpop.f32.mrf.mxu0
        %v1317 = vadd.f32 0.0, %v1316
        %v1318 = vpop.f32.mrf.mxu0
        %v1319 = vadd.f32 0.0, %v1318
        %v1320 = vpop.f32.mrf.mxu0
        %v1321 = vadd.f32 0.0, %v1320
        %1322 = vmatprep.mubr.bf16.mxu0 %v1166
        %1323 = vmatmul.mubr.bf16.gmra.mxu0 %v958
        %v1324 = vpop.f32.mrf.mxu0
        %v1325 = vadd.f32 0.0, %v1324
        %v1326 = vpop.f32.mrf.mxu0
        %v1327 = vadd.f32 0.0, %v1326
        %v1328 = vpop.f32.mrf.mxu0
        %v1329 = vadd.f32 0.0, %v1328
        %v1330 = vpop.f32.mrf.mxu0
        %v1331 = vadd.f32 0.0, %v1330
        %1332 = vmatprep.mubr.bf16.mxu0 %v1169
        %1333 = vmatmul.mubr.bf16.gmra.mxu0 %v961
        %v1334 = vpop.f32.mrf.mxu0
        %v1335 = vadd.f32 0.0, %v1334
        %v1336 = vpop.f32.mrf.mxu0
        %v1337 = vadd.f32 0.0, %v1336
        %v1338 = vpop.f32.mrf.mxu0
        %v1339 = vadd.f32 0.0, %v1338
        %v1340 = vpop.f32.mrf.mxu0
        %v1341 = vadd.f32 0.0, %v1340
        %1342 = vmatprep.mubr.bf16.mxu0 %v1172
        %1343 = vmatmul.mubr.bf16.gmra.mxu0 %v964
        %v1344 = vpop.f32.mrf.mxu0
        %v1345 = vadd.f32 0.0, %v1344
        %v1346 = vpop.f32.mrf.mxu0
        %v1347 = vadd.f32 0.0, %v1346
        %v1348 = vpop.f32.mrf.mxu0
        %v1349 = vadd.f32 0.0, %v1348
        %v1350 = vpop.f32.mrf.mxu0
        %v1351 = vadd.f32 0.0, %v1350
        %1352 = vmatprep.mubr.bf16.mxu0 %v1175
        %1353 = vmatmul.mubr.bf16.gmra.mxu0 %v967
        %v1354 = vpop.f32.mrf.mxu0
        %v1355 = vadd.f32 0.0, %v1354
        %v1356 = vpop.f32.mrf.mxu0
        %v1357 = vadd.f32 0.0, %v1356
        %v1358 = vpop.f32.mrf.mxu0
        %v1359 = vadd.f32 0.0, %v1358
        %v1360 = vpop.f32.mrf.mxu0
        %v1361 = vadd.f32 0.0, %v1360
        %1362 = vmatprep.mubr.bf16.mxu0 %v1178
        %1363 = vmatmul.mubr.bf16.gmra.mxu0 %v970
        %v1364 = vpop.f32.mrf.mxu0
        %v1365 = vadd.f32 0.0, %v1364
        %v1366 = vpop.f32.mrf.mxu0
        %v1367 = vadd.f32 0.0, %v1366
        %v1368 = vpop.f32.mrf.mxu0
        %v1369 = vadd.f32 0.0, %v1368
        %v1370 = vpop.f32.mrf.mxu0
        %v1371 = vadd.f32 0.0, %v1370
        %1372 = vdwg.mxu0
        %1373 = vmatprep.subr.bf16.mxu0 0
        %1374 = vmatpush1.bf16.msra.mxu0 %v1095
        %1375 = vmatprep.subr.bf16.mxu0 0
        %1376 = vmatpush1.bf16.msra.mxu0 %v1092
        %1377 = vmatprep.subr.bf16.mxu0 0
        %1378 = vmatpush1.bf16.msra.mxu0 %v1089
        %1379 = vmatprep.subr.bf16.mxu0 0
        %1380 = vmatpush1.bf16.msra.mxu0 %v1086
        %1381 = vmatprep.subr.bf16.mxu0 0
        %1382 = vmatpush1.bf16.msra.mxu0 %v1083
        %1383 = vmatprep.subr.bf16.mxu0 0
        %1384 = vmatpush1.bf16.msra.mxu0 %v1080
        %1385 = vmatprep.subr.bf16.mxu0 0
        %1386 = vmatpush1.bf16.msra.mxu0 %v1077
        %1387 = vmatprep.subr.bf16.mxu0 0
        %1388 = vmatpush1.bf16.msra.mxu0 %v1074
        %1389 = vmatprep.subr.bf16.mxu0 0
        %1390 = vmatpush2.bf16.msra.mxu0 0
        %1391 = vmatprep.subr.bf16.mxu0 0
        %1392 = vmatpush2.bf16.msra.mxu0 0
        %1393 = vmatprep.subr.bf16.mxu0 0
        %1394 = vmatpush2.bf16.msra.mxu0 0
        %1395 = vmatprep.subr.bf16.mxu0 0
        %1396 = vmatpush2.bf16.msra.mxu0 0
        %1397 = vmatprep.subr.bf16.mxu0 0
        %1398 = vmatpush2.bf16.msra.mxu0 0
        %1399 = vmatprep.subr.bf16.mxu0 0
        %1400 = vmatpush2.bf16.msra.mxu0 0
        %1401 = vmatprep.subr.bf16.mxu0 0
        %1402 = vmatpush2.bf16.msra.mxu0 %v1101
        %1403 = vmatprep.subr.bf16.mxu0 0
        %1404 = vmatpush2.bf16.msra.mxu0 %v1098
        %1405 = vmatprep.mubr.bf16.mxu0 %v1133
        %1406 = vmatmul.mubr.bf16.gmra.mxu0 %v925
        %v1407 = vpop.f32.mrf.mxu0
        %v1408 = vadd.f32 0.0, %v1407
        %v1409 = vpop.f32.mrf.mxu0
        %v1410 = vpop.f32.mrf.mxu0
        %v1411 = vadd.f32 0.0, %v1410
        %v1412 = vpop.f32.mrf.mxu0
        %1413 = vmatprep.mubr.bf16.mxu0 %v1136
        %1414 = vmatmul.mubr.bf16.gmra.mxu0 %v928
        %v1415 = vpop.f32.mrf.mxu0
        %v1416 = vadd.f32 0.0, %v1415
        %v1417 = vpop.f32.mrf.mxu0
        %v1418 = vpop.f32.mrf.mxu0
        %v1419 = vadd.f32 0.0, %v1418
        %v1420 = vpop.f32.mrf.mxu0
        %1421 = vmatprep.mubr.bf16.mxu0 %v1139
        %1422 = vmatmul.mubr.bf16.gmra.mxu0 %v931
        %v1423 = vpop.f32.mrf.mxu0
        %v1424 = vadd.f32 0.0, %v1423
        %v1425 = vpop.f32.mrf.mxu0
        %v1426 = vpop.f32.mrf.mxu0
        %v1427 = vadd.f32 0.0, %v1426
        %v1428 = vpop.f32.mrf.mxu0
        %1429 = vmatprep.mubr.bf16.mxu0 %v1142
        %1430 = vmatmul.mubr.bf16.gmra.mxu0 %v934
        %v1431 = vpop.f32.mrf.mxu0
        %v1432 = vadd.f32 0.0, %v1431
        %v1433 = vpop.f32.mrf.mxu0
        %v1434 = vpop.f32.mrf.mxu0
        %v1435 = vadd.f32 0.0, %v1434
        %v1436 = vpop.f32.mrf.mxu0
        %1437 = vmatprep.mubr.bf16.mxu0 %v1145
        %1438 = vmatmul.mubr.bf16.gmra.mxu0 %v937
        %v1439 = vpop.f32.mrf.mxu0
        %v1440 = vadd.f32 0.0, %v1439
        %v1441 = vpop.f32.mrf.mxu0
        %v1442 = vpop.f32.mrf.mxu0
        %v1443 = vadd.f32 0.0, %v1442
        %v1444 = vpop.f32.mrf.mxu0
        %1445 = vmatprep.mubr.bf16.mxu0 %v1148
        %1446 = vmatmul.mubr.bf16.gmra.mxu0 %v940
        %v1447 = vpop.f32.mrf.mxu0
        %v1448 = vadd.f32 0.0, %v1447
        %v1449 = vpop.f32.mrf.mxu0
        %v1450 = vpop.f32.mrf.mxu0
        %v1451 = vadd.f32 0.0, %v1450
        %v1452 = vpop.f32.mrf.mxu0
        %1453 = vmatprep.mubr.bf16.mxu0 %v1151
        %1454 = vmatmul.mubr.bf16.gmra.mxu0 %v943
        %v1455 = vpop.f32.mrf.mxu0
        %v1456 = vadd.f32 0.0, %v1455
        %v1457 = vpop.f32.mrf.mxu0
        %v1458 = vpop.f32.mrf.mxu0
        %v1459 = vadd.f32 0.0, %v1458
        %v1460 = vpop.f32.mrf.mxu0
        %1461 = vmatprep.mubr.bf16.mxu0 %v1154
        %1462 = vmatmul.mubr.bf16.gmra.mxu0 %v946
        %v1463 = vpop.f32.mrf.mxu0
        %v1464 = vadd.f32 0.0, %v1463
        %v1465 = vpop.f32.mrf.mxu0
        %v1466 = vpop.f32.mrf.mxu0
        %v1467 = vadd.f32 0.0, %v1466
        %v1468 = vpop.f32.mrf.mxu0
        %1469 = vmatprep.mubr.bf16.mxu0 %v1157
        %1470 = vmatmul.mubr.bf16.gmra.mxu0 %v949
        %v1471 = vpop.f32.mrf.mxu0
        %v1472 = vadd.f32 0.0, %v1471
        %v1473 = vpop.f32.mrf.mxu0
        %v1474 = vpop.f32.mrf.mxu0
        %v1475 = vadd.f32 0.0, %v1474
        %v1476 = vpop.f32.mrf.mxu0
        %1477 = vmatprep.mubr.bf16.mxu0 %v1160
        %1478 = vmatmul.mubr.bf16.gmra.mxu0 %v952
        %v1479 = vpop.f32.mrf.mxu0
        %v1480 = vadd.f32 0.0, %v1479
        %v1481 = vpop.f32.mrf.mxu0
        %v1482 = vpop.f32.mrf.mxu0
        %v1483 = vadd.f32 0.0, %v1482
        %v1484 = vpop.f32.mrf.mxu0
        %1485 = vmatprep.mubr.bf16.mxu0 %v1163
        %1486 = vmatmul.mubr.bf16.gmra.mxu0 %v955
        %v1487 = vpop.f32.mrf.mxu0
        %v1488 = vadd.f32 0.0, %v1487
        %v1489 = vpop.f32.mrf.mxu0
        %v1490 = vpop.f32.mrf.mxu0
        %v1491 = vadd.f32 0.0, %v1490
        %v1492 = vpop.f32.mrf.mxu0
        %1493 = vmatprep.mubr.bf16.mxu0 %v1166
        %1494 = vmatmul.mubr.bf16.gmra.mxu0 %v958
        %v1495 = vpop.f32.mrf.mxu0
        %v1496 = vadd.f32 0.0, %v1495
        %v1497 = vpop.f32.mrf.mxu0
        %v1498 = vpop.f32.mrf.mxu0
        %v1499 = vadd.f32 0.0, %v1498
        %v1500 = vpop.f32.mrf.mxu0
        %1501 = vmatprep.mubr.bf16.mxu0 %v1169
        %1502 = vmatmul.mubr.bf16.gmra.mxu0 %v961
        %v1503 = vpop.f32.mrf.mxu0
        %v1504 = vadd.f32 0.0, %v1503
        %v1505 = vpop.f32.mrf.mxu0
        %v1506 = vpop.f32.mrf.mxu0
        %v1507 = vadd.f32 0.0, %v1506
        %v1508 = vpop.f32.mrf.mxu0
        %1509 = vmatprep.mubr.bf16.mxu0 %v1172
        %1510 = vmatmul.mubr.bf16.gmra.mxu0 %v964
        %v1511 = vpop.f32.mrf.mxu0
        %v1512 = vadd.f32 0.0, %v1511
        %v1513 = vpop.f32.mrf.mxu0
        %v1514 = vpop.f32.mrf.mxu0
        %v1515 = vadd.f32 0.0, %v1514
        %v1516 = vpop.f32.mrf.mxu0
        %1517 = vmatprep.mubr.bf16.mxu0 %v1175
        %1518 = vmatmul.mubr.bf16.gmra.mxu0 %v967
        %v1519 = vpop.f32.mrf.mxu0
        %v1520 = vadd.f32 0.0, %v1519
        %v1521 = vpop.f32.mrf.mxu0
        %v1522 = vpop.f32.mrf.mxu0
        %v1523 = vadd.f32 0.0, %v1522
        %v1524 = vpop.f32.mrf.mxu0
        %1525 = vmatprep.mubr.bf16.mxu0 %v1178
        %1526 = vmatmul.mubr.bf16.gmra.mxu0 %v970
        %v1527 = vpop.f32.mrf.mxu0
        %v1528 = vadd.f32 0.0, %v1527
        %v1529 = vpop.f32.mrf.mxu0
        %v1530 = vpop.f32.mrf.mxu0
        %v1531 = vadd.f32 0.0, %v1530
        %v1532 = vpop.f32.mrf.mxu0
        %1533 = vdwg.mxu0
        %v1534 = vmax.f32 %v1215, %v1219
        %v1535 = vmax.f32 %v1534, %v1225
        %v1536 = vmax.f32 %v1535, %v1229
        %v1537 = vrot.slane %v1536, 4
        %v1538 = vmax.f32 %v1536, %v1537
        %v1539 = vrot.slane %v1538, 2
        %v1540 = vmax.f32 %v1538, %v1539
        %v1541 = vrot.slane %v1540, 1
        %v1542 = vmax.f32 %v1540, %v1541
        %v1543 = vmax.f32 %v1217, %v1221
        %v1544 = vmax.f32 %v1543, %v1227
        %v1545 = vmax.f32 %v1544, %v1231
        %v1546 = vrot.slane %v1545, 4
        %v1547 = vmax.f32 %v1545, %v1546
        %v1548 = vrot.slane %v1547, 2
        %v1549 = vmax.f32 %v1547, %v1548
        %v1550 = vrot.slane %v1549, 1
        %v1551 = vmax.f32 %v1549, %v1550
        %v1552 = vmax.f32 %v1408, %v1411
        %v1553 = vmax.f32 %v1552, %v1416
        %v1554 = vmax.f32 %v1553, %v1419
        %v1555 = vrot.slane %v1554, 4
        %v1556 = vmax.f32 %v1554, %v1555
        %v1557 = vrot.slane %v1556, 2
        %v1558 = vmax.f32 %v1556, %v1557
        %v1559 = vrot.slane %v1558, 1
        %v1560 = vmax.f32 %v1558, %v1559
        %v1561 = vmax.f32 %v1235, %v1239
        %v1562 = vmax.f32 %v1561, %v1245
        %v1563 = vmax.f32 %v1562, %v1249
        %v1564 = vrot.slane %v1563, 4
        %v1565 = vmax.f32 %v1563, %v1564
        %v1566 = vrot.slane %v1565, 2
        %v1567 = vmax.f32 %v1565, %v1566
        %v1568 = vrot.slane %v1567, 1
        %v1569 = vmax.f32 %v1567, %v1568
        %v1570 = vmax.f32 %v1237, %v1241
        %v1571 = vmax.f32 %v1570, %v1247
        %v1572 = vmax.f32 %v1571, %v1251
        %v1573 = vrot.slane %v1572, 4
        %v1574 = vmax.f32 %v1572, %v1573
        %v1575 = vrot.slane %v1574, 2
        %v1576 = vmax.f32 %v1574, %v1575
        %v1577 = vrot.slane %v1576, 1
        %v1578 = vmax.f32 %v1576, %v1577
        %v1579 = vmax.f32 %v1424, %v1427
        %v1580 = vmax.f32 %v1579, %v1432
        %v1581 = vmax.f32 %v1580, %v1435
        %v1582 = vrot.slane %v1581, 4
        %v1583 = vmax.f32 %v1581, %v1582
        %v1584 = vrot.slane %v1583, 2
        %v1585 = vmax.f32 %v1583, %v1584
        %v1586 = vrot.slane %v1585, 1
        %v1587 = vmax.f32 %v1585, %v1586
        %v1588 = vmax.f32 %v1255, %v1259
        %v1589 = vmax.f32 %v1588, %v1265
        %v1590 = vmax.f32 %v1589, %v1269
        %v1591 = vrot.slane %v1590, 4
        %v1592 = vmax.f32 %v1590, %v1591
        %v1593 = vrot.slane %v1592, 2
        %v1594 = vmax.f32 %v1592, %v1593
        %v1595 = vrot.slane %v1594, 1
        %v1596 = vmax.f32 %v1594, %v1595
        %v1597 = vmax.f32 %v1257, %v1261
        %v1598 = vmax.f32 %v1597, %v1267
        %v1599 = vmax.f32 %v1598, %v1271
        %v1600 = vrot.slane %v1599, 4
        %v1601 = vmax.f32 %v1599, %v1600
        %v1602 = vrot.slane %v1601, 2
        %v1603 = vmax.f32 %v1601, %v1602
        %v1604 = vrot.slane %v1603, 1
        %v1605 = vmax.f32 %v1603, %v1604
        %v1606 = vmax.f32 %v1440, %v1443
        %v1607 = vmax.f32 %v1606, %v1448
        %v1608 = vmax.f32 %v1607, %v1451
        %v1609 = vrot.slane %v1608, 4
        %v1610 = vmax.f32 %v1608, %v1609
        %v1611 = vrot.slane %v1610, 2
        %v1612 = vmax.f32 %v1610, %v1611
        %v1613 = vrot.slane %v1612, 1
        %v1614 = vmax.f32 %v1612, %v1613
        %v1615 = vmax.f32 %v1275, %v1279
        %v1616 = vmax.f32 %v1615, %v1285
        %v1617 = vmax.f32 %v1616, %v1289
        %v1618 = vrot.slane %v1617, 4
        %v1619 = vmax.f32 %v1617, %v1618
        %v1620 = vrot.slane %v1619, 2
        %v1621 = vmax.f32 %v1619, %v1620
        %v1622 = vrot.slane %v1621, 1
        %v1623 = vmax.f32 %v1621, %v1622
        %v1624 = vmax.f32 %v1277, %v1281
        %v1625 = vmax.f32 %v1624, %v1287
        %v1626 = vmax.f32 %v1625, %v1291
        %v1627 = vrot.slane %v1626, 4
        %v1628 = vmax.f32 %v1626, %v1627
        %v1629 = vrot.slane %v1628, 2
        %v1630 = vmax.f32 %v1628, %v1629
        %v1631 = vrot.slane %v1630, 1
        %v1632 = vmax.f32 %v1630, %v1631
        %v1633 = vmax.f32 %v1456, %v1459
        %v1634 = vmax.f32 %v1633, %v1464
        %v1635 = vmax.f32 %v1634, %v1467
        %v1636 = vrot.slane %v1635, 4
        %v1637 = vmax.f32 %v1635, %v1636
        %v1638 = vrot.slane %v1637, 2
        %v1639 = vmax.f32 %v1637, %v1638
        %v1640 = vrot.slane %v1639, 1
        %v1641 = vmax.f32 %v1639, %v1640
        %v1642 = vmax.f32 %v1295, %v1299
        %v1643 = vmax.f32 %v1642, %v1305
        %v1644 = vmax.f32 %v1643, %v1309
        %v1645 = vrot.slane %v1644, 4
        %v1646 = vmax.f32 %v1644, %v1645
        %v1647 = vrot.slane %v1646, 2
        %v1648 = vmax.f32 %v1646, %v1647
        %v1649 = vrot.slane %v1648, 1
        %v1650 = vmax.f32 %v1648, %v1649
        %v1651 = vmax.f32 %v1297, %v1301
        %v1652 = vmax.f32 %v1651, %v1307
        %v1653 = vmax.f32 %v1652, %v1311
        %v1654 = vrot.slane %v1653, 4
        %v1655 = vmax.f32 %v1653, %v1654
        %v1656 = vrot.slane %v1655, 2
        %v1657 = vmax.f32 %v1655, %v1656
        %v1658 = vrot.slane %v1657, 1
        %v1659 = vmax.f32 %v1657, %v1658
        %v1660 = vmax.f32 %v1472, %v1475
        %v1661 = vmax.f32 %v1660, %v1480
        %v1662 = vmax.f32 %v1661, %v1483
        %v1663 = vrot.slane %v1662, 4
        %v1664 = vmax.f32 %v1662, %v1663
        %v1665 = vrot.slane %v1664, 2
        %v1666 = vmax.f32 %v1664, %v1665
        %v1667 = vrot.slane %v1666, 1
        %v1668 = vmax.f32 %v1666, %v1667
        %v1669 = vmax.f32 %v1315, %v1319
        %v1670 = vmax.f32 %v1669, %v1325
        %v1671 = vmax.f32 %v1670, %v1329
        %v1672 = vrot.slane %v1671, 4
        %v1673 = vmax.f32 %v1671, %v1672
        %v1674 = vrot.slane %v1673, 2
        %v1675 = vmax.f32 %v1673, %v1674
        %v1676 = vrot.slane %v1675, 1
        %v1677 = vmax.f32 %v1675, %v1676
        %v1678 = vmax.f32 %v1317, %v1321
        %v1679 = vmax.f32 %v1678, %v1327
        %v1680 = vmax.f32 %v1679, %v1331
        %v1681 = vrot.slane %v1680, 4
        %v1682 = vmax.f32 %v1680, %v1681
        %v1683 = vrot.slane %v1682, 2
        %v1684 = vmax.f32 %v1682, %v1683
        %v1685 = vrot.slane %v1684, 1
        %v1686 = vmax.f32 %v1684, %v1685
        %v1687 = vmax.f32 %v1488, %v1491
        %v1688 = vmax.f32 %v1687, %v1496
        %v1689 = vmax.f32 %v1688, %v1499
        %v1690 = vrot.slane %v1689, 4
        %v1691 = vmax.f32 %v1689, %v1690
        %v1692 = vrot.slane %v1691, 2
        %v1693 = vmax.f32 %v1691, %v1692
        %v1694 = vrot.slane %v1693, 1
        %v1695 = vmax.f32 %v1693, %v1694
        %v1696 = vmax.f32 %v1335, %v1339
        %v1697 = vmax.f32 %v1696, %v1345
        %v1698 = vmax.f32 %v1697, %v1349
        %v1699 = vrot.slane %v1698, 4
        %v1700 = vmax.f32 %v1698, %v1699
        %v1701 = vrot.slane %v1700, 2
        %v1702 = vmax.f32 %v1700, %v1701
        %v1703 = vrot.slane %v1702, 1
        %v1704 = vmax.f32 %v1702, %v1703
        %v1705 = vmax.f32 %v1337, %v1341
        %v1706 = vmax.f32 %v1705, %v1347
        %v1707 = vmax.f32 %v1706, %v1351
        %v1708 = vrot.slane %v1707, 4
        %v1709 = vmax.f32 %v1707, %v1708
        %v1710 = vrot.slane %v1709, 2
        %v1711 = vmax.f32 %v1709, %v1710
        %v1712 = vrot.slane %v1711, 1
        %v1713 = vmax.f32 %v1711, %v1712
        %v1714 = vmax.f32 %v1504, %v1507
        %v1715 = vmax.f32 %v1714, %v1512
        %v1716 = vmax.f32 %v1715, %v1515
        %v1717 = vrot.slane %v1716, 4
        %v1718 = vmax.f32 %v1716, %v1717
        %v1719 = vrot.slane %v1718, 2
        %v1720 = vmax.f32 %v1718, %v1719
        %v1721 = vrot.slane %v1720, 1
        %v1722 = vmax.f32 %v1720, %v1721
        %v1723 = vmax.f32 %v1355, %v1359
        %v1724 = vmax.f32 %v1723, %v1365
        %v1725 = vmax.f32 %v1724, %v1369
        %v1726 = vrot.slane %v1725, 4
        %v1727 = vmax.f32 %v1725, %v1726
        %v1728 = vrot.slane %v1727, 2
        %v1729 = vmax.f32 %v1727, %v1728
        %v1730 = vrot.slane %v1729, 1
        %v1731 = vmax.f32 %v1729, %v1730
        %v1732 = vmax.f32 %v1357, %v1361
        %v1733 = vmax.f32 %v1732, %v1367
        %v1734 = vmax.f32 %v1733, %v1371
        %v1735 = vrot.slane %v1734, 4
        %v1736 = vmax.f32 %v1734, %v1735
        %v1737 = vrot.slane %v1736, 2
        %v1738 = vmax.f32 %v1736, %v1737
        %v1739 = vrot.slane %v1738, 1
        %v1740 = vmax.f32 %v1738, %v1739
        %v1741 = vmax.f32 %v1520, %v1523
        %v1742 = vmax.f32 %v1741, %v1528
        %v1743 = vmax.f32 %v1742, %v1531
        %v1744 = vrot.slane %v1743, 4
        %v1745 = vmax.f32 %v1743, %v1744
        %v1746 = vrot.slane %v1745, 2
        %v1747 = vmax.f32 %v1745, %v1746
        %v1748 = vrot.slane %v1747, 1
        %v1749 = vmax.f32 %v1747, %v1748
        %v1750 = vld [vmem:[%s2] sm:$0x7]
        %v1752 = vlaneseq
        %v1753 = vshrl.u32 %v1752, 7
        %v1754 = vsub.s32 0, %v1753
        %v1755 = vrot.slane %v1750, %v1754
        %v1756 = vlaneseq
        %v1757 = vshrl.u32 %v1756, 7
        %v1758 = vsub.s32 1, %v1757
        %v1759 = vrot.slane %v1750, %v1758
        %v1760 = vlaneseq
        %v1761 = vshrl.u32 %v1760, 7
        %v1762 = vsub.s32 2, %v1761
        %v1763 = vrot.slane %v1750, %v1762
        %v1767 = vadd.f32 %v1542, %v1755
        %v1768 = vadd.f32 %v1551, %v1759
        %v1769 = vadd.f32 %v1560, %v1763
        %v1770 = vadd.f32 %v1569, %v1755
        %v1771 = vadd.f32 %v1578, %v1759
        %v1772 = vadd.f32 %v1587, %v1763
        %v1773 = vadd.f32 %v1596, %v1755
        %v1774 = vadd.f32 %v1605, %v1759
        %v1775 = vadd.f32 %v1614, %v1763
        %v1776 = vadd.f32 %v1623, %v1755
        %v1777 = vadd.f32 %v1632, %v1759
        %v1778 = vadd.f32 %v1641, %v1763
        %v1779 = vadd.f32 %v1650, %v1755
        %v1780 = vadd.f32 %v1659, %v1759
        %v1781 = vadd.f32 %v1668, %v1763
        %v1782 = vadd.f32 %v1677, %v1755
        %v1783 = vadd.f32 %v1686, %v1759
        %v1784 = vadd.f32 %v1695, %v1763
        %v1785 = vadd.f32 %v1704, %v1755
        %v1786 = vadd.f32 %v1713, %v1759
        %v1787 = vadd.f32 %v1722, %v1763
        %v1788 = vadd.f32 %v1731, %v1755
        %v1789 = vadd.f32 %v1740, %v1759
        %v1790 = vadd.f32 %v1749, %v1763
        %v1791 = vtanh.pop %v1767
        %v1792 = vtanh.pop %v1768
        %v1793 = vtanh.pop %v1769
        %v1794 = vtanh.pop %v1770
        %v1795 = vtanh.pop %v1771
        %v1796 = vtanh.pop %v1772
        %v1797 = vtanh.pop %v1773
        %v1798 = vtanh.pop %v1774
        %v1799 = vtanh.pop %v1775
        %v1800 = vtanh.pop %v1776
        %v1801 = vtanh.pop %v1777
        %v1802 = vtanh.pop %v1778
        %v1803 = vtanh.pop %v1779
        %v1804 = vtanh.pop %v1780
        %v1805 = vtanh.pop %v1781
        %v1806 = vtanh.pop %v1782
        %v1807 = vtanh.pop %v1783
        %v1808 = vtanh.pop %v1784
        %v1809 = vtanh.pop %v1785
        %v1810 = vtanh.pop %v1786
        %v1811 = vtanh.pop %v1787
        %v1812 = vtanh.pop %v1788
        %v1813 = vtanh.pop %v1789
        %v1814 = vtanh.pop %v1790
        %v1815 = vpack.c.bf16 %v1791, %v1791
        %v1816 = vpack.c.bf16 %v1792, %v1792
        %v1817 = vpack.c.bf16 %v1793, %v1793
        %v1818 = vpack.c.bf16 %v1794, %v1794
        %v1819 = vpack.c.bf16 %v1795, %v1795
        %v1820 = vpack.c.bf16 %v1796, %v1796
        %v1821 = vpack.c.bf16 %v1797, %v1797
        %v1822 = vpack.c.bf16 %v1798, %v1798
        %v1823 = vpack.c.bf16 %v1799, %v1799
        %v1824 = vpack.c.bf16 %v1800, %v1800
        %v1825 = vpack.c.bf16 %v1801, %v1801
        %v1826 = vpack.c.bf16 %v1802, %v1802
        %v1827 = vpack.c.bf16 %v1803, %v1803
        %v1828 = vpack.c.bf16 %v1804, %v1804
        %v1829 = vpack.c.bf16 %v1805, %v1805
        %v1830 = vpack.c.bf16 %v1806, %v1806
        %v1831 = vpack.c.bf16 %v1807, %v1807
        %v1832 = vpack.c.bf16 %v1808, %v1808
        %v1833 = vpack.c.bf16 %v1809, %v1809
        %v1834 = vpack.c.bf16 %v1810, %v1810
        %v1835 = vpack.c.bf16 %v1811, %v1811
        %v1836 = vpack.c.bf16 %v1812, %v1812
        %v1837 = vpack.c.bf16 %v1813, %v1813
        %v1838 = vpack.c.bf16 %v1814, %v1814
        %v1839 = vld [vmem:[%s3] sm:$0xf]
        %v1840 = vld [vmem:[%s3 + $0x4] sm:$0xf]
        %v1841 = vld [vmem:[%s3 + $0x8] sm:$0xf]
        %v1842 = vld [vmem:[%s3 + $0xc] sm:$0xf]
        %v1843 = vld [vmem:[%s3 + $0x10] sm:$0xf]
        %v1844 = vld [vmem:[%s3 + $0x14] sm:$0xf]
        %v1845 = vld [vmem:[%s3 + $0x18] sm:$0xf]
        %v1846 = vld [vmem:[%s3 + $0x1c] sm:$0xf]
        %v1847 = vld [vmem:[%s3 + $0x20] sm:$0xf]
        %v1848 = vld [vmem:[%s3 + $0x24] sm:$0xf]
        %v1849 = vld [vmem:[%s3 + $0x28] sm:$0xf]
        %v1850 = vld [vmem:[%s3 + $0x2c] sm:$0xf]
        %v1851 = vld [vmem:[%s3 + $0x30] sm:$0xf]
        %v1852 = vld [vmem:[%s3 + $0x34] sm:$0xf]
        %v1853 = vld [vmem:[%s3 + $0x38] sm:$0xf]
        %v1854 = vld [vmem:[%s3 + $0x3c] sm:$0xf]
        %v1855 = vld [vmem:[%s3 + $0x40] sm:$0xf]
        %v1856 = vld [vmem:[%s3 + $0x44] sm:$0xf]
        %v1857 = vld [vmem:[%s3 + $0x48] sm:$0xf]
        %v1858 = vld [vmem:[%s3 + $0x4c] sm:$0xf]
        %v1859 = vld [vmem:[%s3 + $0x50] sm:$0xf]
        %v1860 = vld [vmem:[%s3 + $0x54] sm:$0xf]
        %v1861 = vld [vmem:[%s3 + $0x58] sm:$0xf]
        %v1862 = vld [vmem:[%s3 + $0x5c] sm:$0xf]
        %v1863 = vld [vmem:[%s3 + $0x60] sm:$0xf]
        %v1864 = vld [vmem:[%s3 + $0x64] sm:$0xf]
        %v1865 = vld [vmem:[%s3 + $0x68] sm:$0xf]
        %v1866 = vld [vmem:[%s3 + $0x6c] sm:$0xf]
        %v1867 = vld [vmem:[%s3 + $0x70] sm:$0xf]
        %v1868 = vld [vmem:[%s3 + $0x74] sm:$0xf]
        %v1869 = vld [vmem:[%s3 + $0x78] sm:$0xf]
        %v1870 = vld [vmem:[%s3 + $0x7c] sm:$0xf]
        %v1871 = vld [vmem:[%s3 + $0x80] sm:$0xf]
        %v1872 = vld [vmem:[%s3 + $0x84] sm:$0xf]
        %v1873 = vld [vmem:[%s3 + $0x88] sm:$0xf]
        %v1874 = vld [vmem:[%s3 + $0x8c] sm:$0xf]
        %v1875 = vld [vmem:[%s3 + $0x90] sm:$0xf]
        %v1876 = vld [vmem:[%s3 + $0x94] sm:$0xf]
        %v1877 = vld [vmem:[%s3 + $0x98] sm:$0xf]
        %v1878 = vld [vmem:[%s3 + $0x9c] sm:$0xf]
        %v1879 = vld [vmem:[%s3 + $0xa0] sm:$0xf]
        %v1880 = vld [vmem:[%s3 + $0xa4] sm:$0xf]
        %v1881 = vld [vmem:[%s3 + $0xa8] sm:$0xf]
        %v1882 = vld [vmem:[%s3 + $0xac] sm:$0xf]
        %v1883 = vld [vmem:[%s3 + $0xb0] sm:$0xf]
        %v1884 = vld [vmem:[%s3 + $0xb4] sm:$0xf]
        %v1885 = vld [vmem:[%s3 + $0xb8] sm:$0xf]
        %v1886 = vld [vmem:[%s3 + $0xbc] sm:$0xf]
        %v1887 = vld [vmem:[%s4] sm:$0x1]
        %v1889 = vlaneseq
        %v1890 = vshrl.u32 %v1889, 7
        %v1891 = vsub.s32 0, %v1890
        %v1892 = vrot.slane %v1887, %v1891
        %v1918 = vunpack.c.l.b16 %v1815
        %v1919 = vunpack.c.l.b16 %v1816
        %v1920 = vunpack.c.l.b16 %v1817
        %v1921 = vunpack.c.l.b16 %v1818
        %v1922 = vunpack.c.l.b16 %v1819
        %v1923 = vunpack.c.l.b16 %v1820
        %v1924 = vunpack.c.l.b16 %v1821
        %v1925 = vunpack.c.l.b16 %v1822
        %v1926 = vunpack.c.l.b16 %v1823
        %v1927 = vunpack.c.l.b16 %v1824
        %v1928 = vunpack.c.l.b16 %v1825
        %v1929 = vunpack.c.l.b16 %v1826
        %v1930 = vunpack.c.l.b16 %v1827
        %v1931 = vunpack.c.l.b16 %v1828
        %v1932 = vunpack.c.l.b16 %v1829
        %v1933 = vunpack.c.l.b16 %v1830
        %v1934 = vunpack.c.l.b16 %v1831
        %v1935 = vunpack.c.l.b16 %v1832
        %v1936 = vunpack.c.l.b16 %v1833
        %v1937 = vunpack.c.l.b16 %v1834
        %v1938 = vunpack.c.l.b16 %v1835
        %v1939 = vunpack.c.l.b16 %v1836
        %v1940 = vunpack.c.l.b16 %v1837
        %v1941 = vunpack.c.l.b16 %v1838
        %v1942 = vrot.slane %v1921, 7
        %vm1943 = vcmask 1041409
        %v1944 = vsel %vm1943, %v1942, %v1918
        %v1945 = vrot.slane %v1924, 6
        %vm1946 = vcmask 1042434
        %v1947 = vsel %vm1946, %v1945, %v1944
        %v1948 = vrot.slane %v1927, 5
        %vm1949 = vcmask 1043459
        %v1950 = vsel %vm1949, %v1948, %v1947
        %v1951 = vrot.slane %v1930, 4
        %vm1952 = vcmask 1044484
        %v1953 = vsel %vm1952, %v1951, %v1950
        %v1954 = vrot.slane %v1933, 3
        %vm1955 = vcmask 1045509
        %v1956 = vsel %vm1955, %v1954, %v1953
        %v1957 = vrot.slane %v1936, 2
        %vm1958 = vcmask 1046534
        %v1959 = vsel %vm1958, %v1957, %v1956
        %v1960 = vrot.slane %v1939, 1
        %vm1961 = vcmask 1047559
        %v1962 = vsel %vm1961, %v1960, %v1959
        %v1963 = vrot.slane %v1922, 7
        %v1964 = vsel %vm1943, %v1963, %v1919
        %v1965 = vrot.slane %v1925, 6
        %v1966 = vsel %vm1946, %v1965, %v1964
        %v1967 = vrot.slane %v1928, 5
        %v1968 = vsel %vm1949, %v1967, %v1966
        %v1969 = vrot.slane %v1931, 4
        %v1970 = vsel %vm1952, %v1969, %v1968
        %v1971 = vrot.slane %v1934, 3
        %v1972 = vsel %vm1955, %v1971, %v1970
        %v1973 = vrot.slane %v1937, 2
        %v1974 = vsel %vm1958, %v1973, %v1972
        %v1975 = vrot.slane %v1940, 1
        %v1976 = vsel %vm1961, %v1975, %v1974
        %v1977 = vrot.slane %v1923, 7
        %v1978 = vsel %vm1943, %v1977, %v1920
        %v1979 = vrot.slane %v1926, 6
        %v1980 = vsel %vm1946, %v1979, %v1978
        %v1981 = vrot.slane %v1929, 5
        %v1982 = vsel %vm1949, %v1981, %v1980
        %v1983 = vrot.slane %v1932, 4
        %v1984 = vsel %vm1952, %v1983, %v1982
        %v1985 = vrot.slane %v1935, 3
        %v1986 = vsel %vm1955, %v1985, %v1984
        %v1987 = vrot.slane %v1938, 2
        %v1988 = vsel %vm1958, %v1987, %v1986
        %v1989 = vrot.slane %v1941, 1
        %v1990 = vsel %vm1961, %v1989, %v1988
        %v1991 = vpack.c.b16 %v1962, %v1962
        %v1992 = vpack.c.b16 %v1976, %v1976
        %v1993 = vpack.c.b16 %v1990, %v1990
        %v2045 = vunpack.c.l.b16 %v1839
        %v2046 = vunpack.c.l.b16 %v1840
        %v2047 = vunpack.c.l.b16 %v1841
        %v2048 = vunpack.c.l.b16 %v1842
        %v2049 = vunpack.c.l.b16 %v1843
        %v2050 = vunpack.c.l.b16 %v1844
        %v2051 = vunpack.c.l.b16 %v1845
        %v2052 = vunpack.c.l.b16 %v1846
        %v2053 = vunpack.c.l.b16 %v1847
        %v2054 = vunpack.c.l.b16 %v1848
        %v2055 = vunpack.c.l.b16 %v1849
        %v2056 = vunpack.c.l.b16 %v1850
        %v2057 = vunpack.c.l.b16 %v1851
        %v2058 = vunpack.c.l.b16 %v1852
        %v2059 = vunpack.c.l.b16 %v1853
        %v2060 = vunpack.c.l.b16 %v1854
        %v2061 = vunpack.c.l.b16 %v1855
        %v2062 = vunpack.c.l.b16 %v1856
        %v2063 = vunpack.c.l.b16 %v1857
        %v2064 = vunpack.c.l.b16 %v1858
        %v2065 = vunpack.c.l.b16 %v1859
        %v2066 = vunpack.c.l.b16 %v1860
        %v2067 = vunpack.c.l.b16 %v1861
        %v2068 = vunpack.c.l.b16 %v1862
        %v2069 = vunpack.c.l.b16 %v1863
        %v2070 = vunpack.c.l.b16 %v1864
        %v2071 = vunpack.c.l.b16 %v1865
        %v2072 = vunpack.c.l.b16 %v1866
        %v2073 = vunpack.c.l.b16 %v1867
        %v2074 = vunpack.c.l.b16 %v1868
        %v2075 = vunpack.c.l.b16 %v1869
        %v2076 = vunpack.c.l.b16 %v1870
        %v2077 = vunpack.c.l.b16 %v1871
        %v2078 = vunpack.c.l.b16 %v1872
        %v2079 = vunpack.c.l.b16 %v1873
        %v2080 = vunpack.c.l.b16 %v1874
        %v2081 = vunpack.c.l.b16 %v1875
        %v2082 = vunpack.c.l.b16 %v1876
        %v2083 = vunpack.c.l.b16 %v1877
        %v2084 = vunpack.c.l.b16 %v1878
        %v2085 = vunpack.c.l.b16 %v1879
        %v2086 = vunpack.c.l.b16 %v1880
        %v2087 = vunpack.c.l.b16 %v1881
        %v2088 = vunpack.c.l.b16 %v1882
        %v2089 = vunpack.c.l.b16 %v1883
        %v2090 = vunpack.c.l.b16 %v1884
        %v2091 = vunpack.c.l.b16 %v1885
        %v2092 = vunpack.c.l.b16 %v1886
        %v2093 = vpack.c.b16 %v2046, %v2045
        %v2094 = vpack.c.b16 %v2048, %v2047
        %v2095 = vpack.c.b16 %v2050, %v2049
        %v2096 = vpack.c.b16 %v2052, %v2051
        %v2097 = vpack.c.b16 %v2054, %v2053
        %v2098 = vpack.c.b16 %v2056, %v2055
        %v2099 = vpack.c.b16 %v2058, %v2057
        %v2100 = vpack.c.b16 %v2060, %v2059
        %v2101 = vpack.c.b16 %v2062, %v2061
        %v2102 = vpack.c.b16 %v2064, %v2063
        %v2103 = vpack.c.b16 %v2066, %v2065
        %v2104 = vpack.c.b16 %v2068, %v2067
        %v2105 = vpack.c.b16 %v2070, %v2069
        %v2106 = vpack.c.b16 %v2072, %v2071
        %v2107 = vpack.c.b16 %v2074, %v2073
        %v2108 = vpack.c.b16 %v2076, %v2075
        %v2109 = vpack.c.b16 %v2078, %v2077
        %v2110 = vpack.c.b16 %v2080, %v2079
        %v2111 = vpack.c.b16 %v2082, %v2081
        %v2112 = vpack.c.b16 %v2084, %v2083
        %v2113 = vpack.c.b16 %v2086, %v2085
        %v2114 = vpack.c.b16 %v2088, %v2087
        %v2115 = vpack.c.b16 %v2090, %v2089
        %v2116 = vpack.c.b16 %v2092, %v2091
        %2141 = vmatprep.subr.bf16.mxu0 0
        %2142 = vmatpush1.bf16.msra.mxu0 %v2100
        %2143 = vmatprep.subr.bf16.mxu0 0
        %2144 = vmatpush1.bf16.msra.mxu0 %v2099
        %2145 = vmatprep.subr.bf16.mxu0 0
        %2146 = vmatpush1.bf16.msra.mxu0 %v2098
        %2147 = vmatprep.subr.bf16.mxu0 0
        %2148 = vmatpush1.bf16.msra.mxu0 %v2097
        %2149 = vmatprep.subr.bf16.mxu0 0
        %2150 = vmatpush1.bf16.msra.mxu0 %v2096
        %2151 = vmatprep.subr.bf16.mxu0 0
        %2152 = vmatpush1.bf16.msra.mxu0 %v2095
        %2153 = vmatprep.subr.bf16.mxu0 0
        %2154 = vmatpush1.bf16.msra.mxu0 %v2094
        %2155 = vmatprep.subr.bf16.mxu0 0
        %2156 = vmatpush1.bf16.msra.mxu0 %v2093
        %2157 = vmatprep.subr.bf16.mxu0 0
        %2158 = vmatpush2.bf16.msra.mxu0 %v2108
        %2159 = vmatprep.subr.bf16.mxu0 0
        %2160 = vmatpush2.bf16.msra.mxu0 %v2107
        %2161 = vmatprep.subr.bf16.mxu0 0
        %2162 = vmatpush2.bf16.msra.mxu0 %v2106
        %2163 = vmatprep.subr.bf16.mxu0 0
        %2164 = vmatpush2.bf16.msra.mxu0 %v2105
        %2165 = vmatprep.subr.bf16.mxu0 0
        %2166 = vmatpush2.bf16.msra.mxu0 %v2104
        %2167 = vmatprep.subr.bf16.mxu0 0
        %2168 = vmatpush2.bf16.msra.mxu0 %v2103
        %2169 = vmatprep.subr.bf16.mxu0 0
        %2170 = vmatpush2.bf16.msra.mxu0 %v2102
        %2171 = vmatprep.subr.bf16.mxu0 0
        %2172 = vmatpush2.bf16.msra.mxu0 %v2101
        %2173 = vmatprep.mubr.bf16.mxu0 %v1992
        %2174 = vmatmul.mubr.bf16.gmra.mxu0 %v1991
        %v2175 = vpop.f32.mrf.mxu0
        %v2176 = vadd.f32 %v1892, %v2175
        %v2177 = vpop.f32.mrf.mxu0
        %v2178 = vpop.f32.mrf.mxu0
        %v2179 = vpop.f32.mrf.mxu0
        %2180 = vdwg.mxu0
        %2181 = vmatprep.subr.bf16.mxu0 0
        %2182 = vmatpush1.bf16.msra.mxu0 %v2116
        %2183 = vmatprep.subr.bf16.mxu0 0
        %2184 = vmatpush1.bf16.msra.mxu0 %v2115
        %2185 = vmatprep.subr.bf16.mxu0 0
        %2186 = vmatpush1.bf16.msra.mxu0 %v2114
        %2187 = vmatprep.subr.bf16.mxu0 0
        %2188 = vmatpush1.bf16.msra.mxu0 %v2113
        %2189 = vmatprep.subr.bf16.mxu0 0
        %2190 = vmatpush1.bf16.msra.mxu0 %v2112
        %2191 = vmatprep.subr.bf16.mxu0 0
        %2192 = vmatpush1.bf16.msra.mxu0 %v2111
        %2193 = vmatprep.subr.bf16.mxu0 0
        %2194 = vmatpush1.bf16.msra.mxu0 %v2110
        %2195 = vmatprep.subr.bf16.mxu0 0
        %2196 = vmatpush1.bf16.msra.mxu0 %v2109
        %2197 = vmatprep.subr.bf16.mxu0 0
        %2198 = vmatpush2.bf16.msra.mxu0 0
        %2199 = vmatprep.subr.bf16.mxu0 0
        %2200 = vmatpush2.bf16.msra.mxu0 0
        %2201 = vmatprep.subr.bf16.mxu0 0
        %2202 = vmatpush2.bf16.msra.mxu0 0
        %2203 = vmatprep.subr.bf16.mxu0 0
        %2204 = vmatpush2.bf16.msra.mxu0 0
        %2205 = vmatprep.subr.bf16.mxu0 0
        %2206 = vmatpush2.bf16.msra.mxu0 0
        %2207 = vmatprep.subr.bf16.mxu0 0
        %2208 = vmatpush2.bf16.msra.mxu0 0
        %2209 = vmatprep.subr.bf16.mxu0 0
        %2210 = vmatpush2.bf16.msra.mxu0 0
        %2211 = vmatprep.subr.bf16.mxu0 0
        %2212 = vmatpush2.bf16.msra.mxu0 0
        %2213 = vmatprep.mubr.bf16.mxu0 0
        %2214 = vmatmul.mubr.bf16.gmra.mxu0 %v1993
        %v2215 = vpop.f32.mrf.mxu0
        %v2216 = vadd.f32 %v2176, %v2215
        %v2217 = vpop.f32.mrf.mxu0
        %v2218 = vpop.f32.mrf.mxu0
        %v2219 = vpop.f32.mrf.mxu0
        %2220 = vdwg.mxu0
        %2221 = vst [vmem:[%s220] sm:$0xff] %v2216
        %s2222 = sand.u32 %s137, 1
        %s2223 = scalar_lea.sflag [#allocation3], %s2222
        %s2224 = sand.u32 %s137, 1
        %s2225 = smul.addr %s2224, 8
        %s2226 = scalar_lea.vmem [#allocation2], %s2225
        // Predicated region
        $region41: #{tpu_custom_call.1} parent=39 // pred_check
          %p2227 = pneg %p147
        $region42: #{tpu_custom_call.1} parent=39 // pred_check_branch
          %2229 = sbr.rel (%p2227) target = $region44
        $region43: #{tpu_custom_call.1} parent=39 // pred_region
          %s2231 = ssub.s32 128, 128
          %2232 = vsyncadd %s2223, %s2231
          %s2233 = smul.addr %s19, 128
          %s2234 = scalar_lea.hbm %s5, %s2233
          %s2236 = sshll.u32 %s2226, 4
          %s2237 = int_to_ptr.vmem [resolvable:$true] %s2236
          %2239 = dma.vmem_to_hbm [thread:$0]  %s2237, 128, %s2234, %s2223
        $region44: #{tpu_custom_call.1} parent=39 // pred_fallthru
          _
      $region40: #{tpu_custom_call.1} parent=5 // pred_fallthru
        _
      %p2240 = scmp.le.s32.totalorder 2, %s14
      // Predicated region
      $region45: #{tpu_custom_call.1} parent=5 // pred_check
        %p2241 = pneg %p2240
      $region46: #{tpu_custom_call.1} parent=5 // pred_check_branch
        %2243 = sbr.rel (%p2241) target = $region48
      $region47: #{tpu_custom_call.1} parent=5 // pred_region
        %s2244 = ssub.s32 %s14, 2
        // Predicated region
        $region49: #{tpu_custom_call.1} parent=47 // pred_check
          %p2245 = pneg %p153
        $region50: #{tpu_custom_call.1} parent=47 // pred_check_branch
          %2247 = sbr.rel (%p2245) target = $region52
        $region51: #{tpu_custom_call.1} parent=47 // pred_region
          %s2248 = sand.u32 %s138, 1
          %s2249 = scalar_lea.sflag [#allocation3], %s2248
          %s2250 = sand.u32 %s138, 1
          %s2251 = smul.addr %s2250, 8
          %s2252 = scalar_lea.vmem [#allocation2], %s2251
          %2253 = dma.done %s2249, 128
        $region52: #{tpu_custom_call.1} parent=47 // pred_fallthru
          _
      $region48: #{tpu_custom_call.1} parent=5 // pred_fallthru
        _
    $region6: #{tpu_custom_call.1} parent=1 // loop_footer
      %s18 = sadd.s32 1, %s14
    $region7: #{tpu_custom_call.1} parent=1 // loop_footer_branch
      %13 = sbr.rel target = $region3
    $region8: #{tpu_custom_call.1} parent=1 // loop_exit
      _
    %2254 = vsyncpa [#allocation3], 1
    %s2255 = scalar_lea.sflag [#allocation3], 1
    %2256 = vsyncpa %s2255, 1

</llo_original>
